<compile_context>
chip_gen: v6e
topology: v6e:2x2x1
jax: 0.10.0
libtpu: 0.0.40
codegen_flags: <defaults>
</compile_context>

<pallas_src>
import functools
import math

import jax
import jax.numpy as jnp
from jax.experimental import pallas as pl
from jax.experimental.pallas import tpu as pltpu


def _ex_z_attention_kernel(z_ref, gamma_ref, beta_ref, wqkvg_ref, bg_ref,
                           smat_ref, lnmat_ref, wo_ref, bo_ref, out_ref,
                           *, n_seq, n_head, c, eps, mxu_dtype, approx_recip):
    """One position tile.

    Packed layout: each row of the last axis holds `pack` consecutive
    positions x D channels, so every array here has a multiple-of-128 lane
    width, every matmul is native (rows, K) @ (K, cols), and no transpose /
    reshape / concat is needed.  All matmuls contract over lanes only, so
    rows (positions) stay independent — ragged last grid blocks are safe.
    """
    N = n_seq
    scale = 1.0 / math.sqrt(c)
    packHC = smat_ref.shape[0]                        # pack * n_head * c

    gamma = gamma_ref[...].astype(jnp.float32)        # (1, pack*D)
    beta = beta_ref[...].astype(jnp.float32)
    lnmat = lnmat_ref[...]                            # (pack*D, pack*D) f32
    wqkvg = wqkvg_ref[...]                            # (pack*D, 4*pack*HC)
    smat = smat_ref[...]                              # (pack*HC, pack*HC) 0/1
    wo = wo_ref[...]                                  # (pack*HC, pack*D)
    bg = bg_ref[...].astype(jnp.float32)              # (1, pack*HC)
    bo = bo_ref[...].astype(jnp.float32)              # (1, pack*D)

    # ---- LayerNorm + fused Q/K/V/G projection, once per MSA sample ----
    # TODO(synk): the i/j loops below are statically unrolled; for large MSA
    # depth N switch to lax.fori_loop / a stacked (N, ...) formulation to
    # bound code size and live ranges.
    qs, ks, vs, gs = [], [], [], []
    for i in range(N):
        zi = z_ref[i].astype(jnp.float32)             # (tile, pack*D)
        # Per-position mean/var over the D channels via a block-diagonal
        # group-mean matmul (keeps LN fully lane-dense in the packed layout).
        mean = jnp.dot(zi, lnmat, preferred_element_type=jnp.float32)
        zc = zi - mean
        var = jnp.dot(zc * zc, lnmat, preferred_element_type=jnp.float32)
        zn = zc * jax.lax.rsqrt(var + eps) * gamma + beta

        proj = jnp.dot(zn.astype(mxu_dtype), wqkvg,
                       preferred_element_type=jnp.float32)   # (tile, 4*pack*HC)
        qs.append(proj[:, 0 * packHC:1 * packHC])
        ks.append(proj[:, 1 * packHC:2 * packHC])
        vs.append(proj[:, 2 * packHC:3 * packHC])
        gs.append(jax.nn.sigmoid(proj[:, 3 * packHC:4 * packHC] + bg))

    # ---- Attention over the MSA (N) axis, per (position, head) ----
    for i in range(N):
        # Per-head score = sum_c q*k, broadcast back over each head's c lanes
        # by the 0/1 block-diagonal matrix (MXU slot, no segmented reduces).
        s_list = []
        for j in range(N):
            qk = (qs[i] * ks[j]).astype(mxu_dtype)
            s_list.append(scale * jnp.dot(qk, smat,
                                          preferred_element_type=jnp.float32))
        m = s_list[0]
        for j in range(1, N):
            m = jnp.maximum(m, s_list[j])

        denom = jnp.zeros_like(m)
        acc = jnp.zeros_like(m)
        for j in range(N):
            e = jnp.exp(s_list[j] - m)
            denom = denom + e
            acc = acc + e * vs[j]

        # Single reciprocal (EUP) instead of per-j normalizing divides.
        o = acc * pl.reciprocal(denom, approx=approx_recip) * gs[i]

        out = jnp.dot(o.astype(mxu_dtype), wo,
                      preferred_element_type=jnp.float32) + bo   # (tile, pack*D)
        out_ref[i] = out.astype(out_ref.dtype)


def _tpu_vmem_info():
    """(vmem_limit_bytes, small_vmem) — generation-aware, with safe fallback."""
    phys = 128 * 1024 * 1024
    try:
        info = pltpu.get_tpu_info()
        for name in ("vmem_capacity_bytes", "vmem_size_bytes", "vmem_bytes"):
            v = getattr(info, name, None)
            if v:
                phys = int(v)
                break
    except Exception:
        pass
    # ~half of physical, capped at 64 MiB (v5e/v6e); 32 MiB on 64-MiB parts.
    limit = min(64 * 1024 * 1024, max(16 * 1024 * 1024, phys // 2))
    return limit, phys <= 64 * 1024 * 1024


def _pick_tile_rows(P4, N, packD, packHC, itemsize_w, vmem_limit, prefer_split):
    """Largest packed-row tile under an honest VMEM budget, then (optionally)
    shrink so >=2 grid steps exist for megacore occupancy."""
    budget = int(vmem_limit * 0.5)

    def footprint(t):
        io = 2 * 2 * N * t * packD * 4                 # dbuf'd z-in + out blocks
        proj = N * t * 4 * packHC * 4                  # per-sample projections
        qkvg = 4 * N * t * packHC * 4                  # hoisted q/k/v/g slices
        work = (N + 6) * t * packHC * 4                # scores / exp / acc temps
        wts = 2 * itemsize_w * (packD * 4 * packHC + packHC * packHC
                                + packHC * packD) + 2 * 4 * packD * packD
        return io + proj + qkvg + work + wts

    cands = sorted({min(P4, s) for s in (8, 16, 32, 64, 128, 256, 512, 1024)}
                   | {P4}, reverse=True)
    cands = [t for t in cands if t == P4 or t % 8 == 0]
    fitting = [t for t in cands if footprint(t) <= budget]
    tile = fitting[0] if fitting else cands[-1]        # fallback = smallest

    # >=2 grid steps when the halved tile stays large enough: always try on
    # 2-TC / small-VMEM parts (v7x), only for big P otherwise.
    min_rows = 32 if prefer_split else 128
    if pl.cdiv(P4, tile) < 2 and P4 >= 2 * min_rows:
        half = -(-P4 // 2)
        half = -(-half // 8) * 8
        tile = max(8, min(tile, half))
    return tile


def ex_z_attention(z, params, *, n_head=8, c=8, mxu_dtype=jnp.bfloat16):
    N, L1, L2, D = z.shape
    P = L1 * L2
    HC = n_head * c
    gamma, beta, wq, wk, wv, wg, bg, wo, bo = params

    # Pack `pack` consecutive positions into one 128-lane row — a bit-identical
    # reshape of the natural (N, L, L, D) layout, so no extra HBM pass on
    # either side of the kernel.  Falls back to pack=1 when shapes disallow it.
    pack = 128 // D if (D <= 128 and 128 % D == 0) else 1
    while pack > 1 and P % pack != 0:
        pack //= 2
    P4 = P // pack
    packD, packHC = pack * D, pack * HC

    f32 = jnp.float32
    eye = jnp.eye(pack, dtype=f32)

    # Constant operands, all pre-oriented for native (rows, K) @ (K, cols) MXU.
    wqkvg = jnp.concatenate(
        [jnp.kron(eye, w.astype(f32)) for w in (wq, wk, wv, wg)], axis=1
    ).astype(mxu_dtype)                                           # (packD, 4*packHC)
    smat = jnp.kron(eye, jnp.kron(jnp.eye(n_head, dtype=f32),
                                  jnp.ones((c, c), f32))).astype(mxu_dtype)
    lnmat = jnp.kron(eye, jnp.full((D, D), 1.0 / D, f32))         # (packD, packD)
    wo_p = jnp.kron(eye, wo.astype(f32)).astype(mxu_dtype)        # (packHC, packD)
    gamma_p = jnp.tile(gamma.astype(f32), pack).reshape(1, packD)
    beta_p = jnp.tile(beta.astype(f32), pack).reshape(1, packD)
    bg_p = jnp.tile(bg.astype(f32), pack).reshape(1, packHC)
    bo_p = jnp.tile(bo.astype(f32), pack).reshape(1, packD)

    z_p = z.reshape(N, P4, packD)                                 # free reshape

    vmem_limit, small_vmem = _tpu_vmem_info()
    tile = _pick_tile_rows(P4, N, packD, packHC,
                           jnp.dtype(mxu_dtype).itemsize, vmem_limit, small_vmem)
    grid = (pl.cdiv(P4, tile),)

    kernel = functools.partial(
        _ex_z_attention_kernel, n_seq=N, n_head=n_head, c=c, eps=1e-5,
        mxu_dtype=mxu_dtype, approx_recip=(mxu_dtype != jnp.float32))

    def const(shape):
        return pl.BlockSpec(shape, lambda p: (0, 0))

    out_p = pl.pallas_call(
        kernel,
        out_shape=jax.ShapeDtypeStruct((N, P4, packD), z.dtype),
        grid_spec=pltpu.PrefetchScalarGridSpec(
            num_scalar_prefetch=0,
            grid=grid,
            in_specs=[
                # z block: default double-buffering; bump to pl.Buffered(3) if
                # xprof shows the DMA exposed between short grid steps.
                pl.BlockSpec((N, tile, packD), lambda p: (0, p, 0)),
                const((1, packD)),            # gamma (packed)
                const((1, packD)),            # beta  (packed)
                const((packD, 4 * packHC)),   # fused W_qkvg (block-diag packed)
                const((1, packHC)),           # bg    (packed)
                const((packHC, packHC)),      # per-head score-sum matrix (0/1)
                const((packD, packD)),        # LN group-mean matrix
                const((packHC, packD)),       # Wo (block-diag packed)
                const((1, packD)),            # bo    (packed)
            ],
            out_specs=pl.BlockSpec((N, tile, packD), lambda p: (0, p, 0)),
        ),
        compiler_params=pltpu.CompilerParams(
            dimension_semantics=("parallel",),
            vmem_limit_bytes=vmem_limit),
    )(z_p, gamma_p, beta_p, wqkvg, bg_p, smat, lnmat, wo_p, bo_p)

    # Packed layout is bit-identical to (N, L, L, D): reshape only, no HBM pass.
    return out_p.reshape(N, L1, L2, D)


def reference(z, params, *, n_head=8, c=8):
    """Pure-JAX reproduction of the PyTorch forward (correctness check)."""
    gamma, beta, wq, wk, wv, wg, bg, wo, bo = params
    N, L, _, D = z.shape
    mean = jnp.mean(z, axis=-1, keepdims=True)
    var = jnp.mean((z - mean) ** 2, axis=-1, keepdims=True)
    zn = (z - mean) / jnp.sqrt(var + 1e-5) * gamma + beta
    q = (zn @ wq).reshape(N, L, L, n_head, c)
    k = (zn @ wk).reshape(N, L, L, n_head, c)
    v = (zn @ wv).reshape(N, L, L, n_head, c)
    g = jax.nn.sigmoid(zn @ wg + bg).reshape(N, L, L, n_head, c)
    att = jnp.einsum('iabhc,jabhc->ijabh', q, k) * (1.0 / math.sqrt(c))
    att = jax.nn.softmax(att, axis=1)
    o = jnp.einsum('ijabh,jabhc->iabhc', att, v) * g
    return o.reshape(N, L, L, n_head * c) @ wo + bo


if __name__ == "__main__":
    N, L, D = 2, 8, 32          # small shapes consistent with z:(N, L, L, D)
    n_head, c = 8, 8
    HC = n_head * c

    key = jax.random.PRNGKey(0)
    keys = jax.random.split(key, 10)
    z = jax.random.normal(keys[0], (N, L, L, D), jnp.float32)

    gamma = 1.0 + 0.1 * jax.random.normal(keys[1], (D,), jnp.float32)
    beta = 0.1 * jax.random.normal(keys[2], (D,), jnp.float32)
    s_in = 1.0 / math.sqrt(D)
    wq = s_in * jax.random.normal(keys[3], (D, HC), jnp.float32)
    wk = s_in * jax.random.normal(keys[4], (D, HC), jnp.float32)
    wv = s_in * jax.random.normal(keys[5], (D, HC), jnp.float32)
    wg = s_in * jax.random.normal(keys[6], (D, HC), jnp.float32)
    bg = 0.1 * jax.random.normal(keys[7], (HC,), jnp.float32)
    wo = (1.0 / math.sqrt(HC)) * jax.random.normal(keys[8], (HC, D), jnp.float32)
    bo = 0.1 * jax.random.normal(keys[9], (D,), jnp.float32)
    params = (gamma, beta, wq, wk, wv, wg, bg, wo, bo)

    ref = reference(z, params, n_head=n_head, c=c)

    # Strict check: f32 MXU operands, exact reciprocal.
    out_f32 = jax.block_until_ready(
        ex_z_attention(z, params, n_head=n_head, c=c, mxu_dtype=jnp.float32))
    assert out_f32.shape == (N, L, L, D), out_f32.shape
    max_err = float(jnp.max(jnp.abs(out_f32 - ref)))
    if max_err > 5e-4:
        raise AssertionError(f"f32 Pallas kernel mismatch, max_err={max_err}")

    # Default perf path (bf16 MXU operands, f32 accumulation): looser tolerance.
    out_bf16 = jax.block_until_ready(
        ex_z_attention(z, params, n_head=n_head, c=c, mxu_dtype=jnp.bfloat16))
    max_err_bf16 = float(jnp.max(jnp.abs(out_bf16 - ref)))
    if max_err_bf16 > 1e-1:
        raise AssertionError(
            f"bf16-MXU Pallas kernel mismatch, max_err={max_err_bf16}")

    print("KERNEL_OK")
</pallas_src>

<mosaic_0001>
module attributes {stable_mosaic.version = 11 : i64} {
  func.func @_ex_z_attention_kernel(%arg0: i32, %arg1: memref<2x16x128xf32, #tpu.memory_space<vmem>>, %arg2: memref<1x128xf32, #tpu.memory_space<vmem>>, %arg3: memref<1x128xf32, #tpu.memory_space<vmem>>, %arg4: memref<128x1024xf32, #tpu.memory_space<vmem>>, %arg5: memref<1x256xf32, #tpu.memory_space<vmem>>, %arg6: memref<256x256xf32, #tpu.memory_space<vmem>>, %arg7: memref<128x128xf32, #tpu.memory_space<vmem>>, %arg8: memref<256x128xf32, #tpu.memory_space<vmem>>, %arg9: memref<1x128xf32, #tpu.memory_space<vmem>>, %arg10: memref<2x16x128xf32, #tpu.memory_space<vmem>>) attributes {dimension_semantics = [#tpu.dimension_semantics<parallel>], iteration_bounds = array<i64: 1>, scalar_prefetch = 0 : i64, scratch_operands = 0 : i64, tpu.core_type = #tpu.core_type<tc>, window_params = [{transform_indices = @transform_0, window_bounds = array<i64: 2, 16, 128>}, {pipeline_mode = #tpu.pipeline_mode<synchronous>, transform_indices = @transform_1, window_bounds = array<i64: 1, 128>}, {pipeline_mode = #tpu.pipeline_mode<synchronous>, transform_indices = @transform_2, window_bounds = array<i64: 1, 128>}, {pipeline_mode = #tpu.pipeline_mode<synchronous>, transform_indices = @transform_3, window_bounds = array<i64: 128, 1024>}, {pipeline_mode = #tpu.pipeline_mode<synchronous>, transform_indices = @transform_4, window_bounds = array<i64: 1, 256>}, {pipeline_mode = #tpu.pipeline_mode<synchronous>, transform_indices = @transform_5, window_bounds = array<i64: 256, 256>}, {pipeline_mode = #tpu.pipeline_mode<synchronous>, transform_indices = @transform_6, window_bounds = array<i64: 128, 128>}, {pipeline_mode = #tpu.pipeline_mode<synchronous>, transform_indices = @transform_7, window_bounds = array<i64: 256, 128>}, {pipeline_mode = #tpu.pipeline_mode<synchronous>, transform_indices = @transform_8, window_bounds = array<i64: 1, 128>}, {transform_indices = @transform_9, window_bounds = array<i64: 2, 16, 128>}]} {
    %c0 = arith.constant 0 : index
    %c0_0 = arith.constant 0 : index
    %0 = vector.load %arg2[%c0, %c0_0] : memref<1x128xf32, #tpu.memory_space<vmem>>, vector<1x128xf32>
    %c0_1 = arith.constant 0 : index
    %c0_2 = arith.constant 0 : index
    %1 = vector.load %arg3[%c0_1, %c0_2] : memref<1x128xf32, #tpu.memory_space<vmem>>, vector<1x128xf32>
    %c0_3 = arith.constant 0 : index
    %c0_4 = arith.constant 0 : index
    %2 = vector.load %arg7[%c0_3, %c0_4] : memref<128x128xf32, #tpu.memory_space<vmem>>, vector<128x128xf32>
    %c0_5 = arith.constant 0 : index
    %c0_6 = arith.constant 0 : index
    %3 = vector.load %arg4[%c0_5, %c0_6] : memref<128x1024xf32, #tpu.memory_space<vmem>>, vector<128x1024xf32>
    %c0_7 = arith.constant 0 : index
    %c0_8 = arith.constant 0 : index
    %4 = vector.load %arg6[%c0_7, %c0_8] : memref<256x256xf32, #tpu.memory_space<vmem>>, vector<256x256xf32>
    %c0_9 = arith.constant 0 : index
    %c0_10 = arith.constant 0 : index
    %5 = vector.load %arg8[%c0_9, %c0_10] : memref<256x128xf32, #tpu.memory_space<vmem>>, vector<256x128xf32>
    %c0_11 = arith.constant 0 : index
    %c0_12 = arith.constant 0 : index
    %6 = vector.load %arg5[%c0_11, %c0_12] : memref<1x256xf32, #tpu.memory_space<vmem>>, vector<1x256xf32>
    %c0_13 = arith.constant 0 : index
    %c0_14 = arith.constant 0 : index
    %7 = vector.load %arg9[%c0_13, %c0_14] : memref<1x128xf32, #tpu.memory_space<vmem>>, vector<1x128xf32>
    %c0_15 = arith.constant 0 : index
    %c0_16 = arith.constant 0 : index
    %c0_17 = arith.constant 0 : index
    %8 = vector.load %arg1[%c0_15, %c0_16, %c0_17] : memref<2x16x128xf32, #tpu.memory_space<vmem>>, vector<1x16x128xf32>
    %9 = vector.shape_cast %8 : vector<1x16x128xf32> to vector<16x128xf32>
    %cst = arith.constant dense<0.000000e+00> : vector<16x128xf32>
    %10 = tpu.matmul %9, %2, %cst {dimension_numbers = #tpu.dot_dimension_numbers<[1], [0], [0], [1], [0, 0, 1, 1], [], []>} : vector<16x128xf32>, vector<128x128xf32>, vector<16x128xf32> -> vector<16x128xf32>
    %11 = arith.subf %9, %10 : vector<16x128xf32>
    %12 = arith.mulf %11, %11 : vector<16x128xf32>
    %cst_18 = arith.constant dense<0.000000e+00> : vector<16x128xf32>
    %13 = tpu.matmul %12, %2, %cst_18 {dimension_numbers = #tpu.dot_dimension_numbers<[1], [0], [0], [1], [0, 0, 1, 1], [], []>} : vector<16x128xf32>, vector<128x128xf32>, vector<16x128xf32> -> vector<16x128xf32>
    %cst_19 = arith.constant 9.99999974E-6 : f32
    %14 = vector.broadcast %cst_19 : f32 to vector<16x128xf32>
    %15 = arith.addf %13, %14 : vector<16x128xf32>
    %16 = math.rsqrt %15 : vector<16x128xf32>
    %17 = arith.mulf %11, %16 : vector<16x128xf32>
    %18 = vector.broadcast %0 : vector<1x128xf32> to vector<16x128xf32>
    %19 = arith.mulf %17, %18 : vector<16x128xf32>
    %20 = vector.broadcast %1 : vector<1x128xf32> to vector<16x128xf32>
    %21 = arith.addf %19, %20 : vector<16x128xf32>
    %cst_20 = arith.constant dense<0.000000e+00> : vector<16x1024xf32>
    %22 = tpu.matmul %21, %3, %cst_20 {dimension_numbers = #tpu.dot_dimension_numbers<[1], [0], [0], [1], [0, 0, 1, 1], [], []>} : vector<16x128xf32>, vector<128x1024xf32>, vector<16x1024xf32> -> vector<16x1024xf32>
    %23 = vector.extract_strided_slice %22 {offsets = [0, 0], sizes = [16, 256], strides = [1, 1]} : vector<16x1024xf32> to vector<16x256xf32>
    %24 = vector.extract_strided_slice %22 {offsets = [0, 256], sizes = [16, 256], strides = [1, 1]} : vector<16x1024xf32> to vector<16x256xf32>
    %25 = vector.extract_strided_slice %22 {offsets = [0, 512], sizes = [16, 256], strides = [1, 1]} : vector<16x1024xf32> to vector<16x256xf32>
    %26 = vector.extract_strided_slice %22 {offsets = [0, 768], sizes = [16, 256], strides = [1, 1]} : vector<16x1024xf32> to vector<16x256xf32>
    %27 = vector.broadcast %6 : vector<1x256xf32> to vector<16x256xf32>
    %28 = arith.addf %26, %27 : vector<16x256xf32>
    %29 = arith.negf %28 : vector<16x256xf32>
    %30 = math.exp %29 : vector<16x256xf32>
    %cst_21 = arith.constant 1.000000e+00 : f32
    %31 = vector.broadcast %cst_21 : f32 to vector<16x256xf32>
    %32 = arith.addf %31, %30 : vector<16x256xf32>
    %33 = arith.divf %31, %32 : vector<16x256xf32>
    %c1 = arith.constant 1 : index
    %c0_22 = arith.constant 0 : index
    %c0_23 = arith.constant 0 : index
    %34 = vector.load %arg1[%c1, %c0_22, %c0_23] : memref<2x16x128xf32, #tpu.memory_space<vmem>>, vector<1x16x128xf32>
    %35 = vector.shape_cast %34 : vector<1x16x128xf32> to vector<16x128xf32>
    %cst_24 = arith.constant dense<0.000000e+00> : vector<16x128xf32>
    %36 = tpu.matmul %35, %2, %cst_24 {dimension_numbers = #tpu.dot_dimension_numbers<[1], [0], [0], [1], [0, 0, 1, 1], [], []>} : vector<16x128xf32>, vector<128x128xf32>, vector<16x128xf32> -> vector<16x128xf32>
    %37 = arith.subf %35, %36 : vector<16x128xf32>
    %38 = arith.mulf %37, %37 : vector<16x128xf32>
    %cst_25 = arith.constant dense<0.000000e+00> : vector<16x128xf32>
    %39 = tpu.matmul %38, %2, %cst_25 {dimension_numbers = #tpu.dot_dimension_numbers<[1], [0], [0], [1], [0, 0, 1, 1], [], []>} : vector<16x128xf32>, vector<128x128xf32>, vector<16x128xf32> -> vector<16x128xf32>
    %cst_26 = arith.constant 9.99999974E-6 : f32
    %40 = vector.broadcast %cst_26 : f32 to vector<16x128xf32>
    %41 = arith.addf %39, %40 : vector<16x128xf32>
    %42 = math.rsqrt %41 : vector<16x128xf32>
    %43 = arith.mulf %37, %42 : vector<16x128xf32>
    %44 = vector.broadcast %0 : vector<1x128xf32> to vector<16x128xf32>
    %45 = arith.mulf %43, %44 : vector<16x128xf32>
    %46 = vector.broadcast %1 : vector<1x128xf32> to vector<16x128xf32>
    %47 = arith.addf %45, %46 : vector<16x128xf32>
    %cst_27 = arith.constant dense<0.000000e+00> : vector<16x1024xf32>
    %48 = tpu.matmul %47, %3, %cst_27 {dimension_numbers = #tpu.dot_dimension_numbers<[1], [0], [0], [1], [0, 0, 1, 1], [], []>} : vector<16x128xf32>, vector<128x1024xf32>, vector<16x1024xf32> -> vector<16x1024xf32>
    %49 = vector.extract_strided_slice %48 {offsets = [0, 0], sizes = [16, 256], strides = [1, 1]} : vector<16x1024xf32> to vector<16x256xf32>
    %50 = vector.extract_strided_slice %48 {offsets = [0, 256], sizes = [16, 256], strides = [1, 1]} : vector<16x1024xf32> to vector<16x256xf32>
    %51 = vector.extract_strided_slice %48 {offsets = [0, 512], sizes = [16, 256], strides = [1, 1]} : vector<16x1024xf32> to vector<16x256xf32>
    %52 = vector.extract_strided_slice %48 {offsets = [0, 768], sizes = [16, 256], strides = [1, 1]} : vector<16x1024xf32> to vector<16x256xf32>
    %53 = vector.broadcast %6 : vector<1x256xf32> to vector<16x256xf32>
    %54 = arith.addf %52, %53 : vector<16x256xf32>
    %55 = arith.negf %54 : vector<16x256xf32>
    %56 = math.exp %55 : vector<16x256xf32>
    %cst_28 = arith.constant 1.000000e+00 : f32
    %57 = vector.broadcast %cst_28 : f32 to vector<16x256xf32>
    %58 = arith.addf %57, %56 : vector<16x256xf32>
    %59 = arith.divf %57, %58 : vector<16x256xf32>
    %60 = arith.mulf %23, %24 : vector<16x256xf32>
    %cst_29 = arith.constant dense<0.000000e+00> : vector<16x256xf32>
    %61 = tpu.matmul %60, %4, %cst_29 {dimension_numbers = #tpu.dot_dimension_numbers<[1], [0], [0], [1], [0, 0, 1, 1], [], []>} : vector<16x256xf32>, vector<256x256xf32>, vector<16x256xf32> -> vector<16x256xf32>
    %cst_30 = arith.constant 0.353553385 : f32
    %62 = vector.broadcast %cst_30 : f32 to vector<16x256xf32>
    %63 = arith.mulf %62, %61 : vector<16x256xf32>
    %64 = arith.mulf %23, %50 : vector<16x256xf32>
    %cst_31 = arith.constant dense<0.000000e+00> : vector<16x256xf32>
    %65 = tpu.matmul %64, %4, %cst_31 {dimension_numbers = #tpu.dot_dimension_numbers<[1], [0], [0], [1], [0, 0, 1, 1], [], []>} : vector<16x256xf32>, vector<256x256xf32>, vector<16x256xf32> -> vector<16x256xf32>
    %cst_32 = arith.constant 0.353553385 : f32
    %66 = vector.broadcast %cst_32 : f32 to vector<16x256xf32>
    %67 = arith.mulf %66, %65 : vector<16x256xf32>
    %68 = arith.maximumf %63, %67 : vector<16x256xf32>
    %cst_33 = arith.constant 0.000000e+00 : f32
    %69 = vector.broadcast %cst_33 : f32 to vector<16x256xf32>
    %cst_34 = arith.constant 0.000000e+00 : f32
    %70 = vector.broadcast %cst_34 : f32 to vector<16x256xf32>
    %71 = arith.subf %63, %68 : vector<16x256xf32>
    %72 = math.exp %71 : vector<16x256xf32>
    %73 = arith.addf %69, %72 : vector<16x256xf32>
    %74 = arith.mulf %72, %25 : vector<16x256xf32>
    %75 = arith.addf %70, %74 : vector<16x256xf32>
    %76 = arith.subf %67, %68 : vector<16x256xf32>
    %77 = math.exp %76 : vector<16x256xf32>
    %78 = arith.addf %73, %77 : vector<16x256xf32>
    %79 = arith.mulf %77, %51 : vector<16x256xf32>
    %80 = arith.addf %75, %79 : vector<16x256xf32>
    %81 = tpu.reciprocal %78 : vector<16x256xf32> -> vector<16x256xf32>
    %82 = arith.mulf %80, %81 : vector<16x256xf32>
    %83 = arith.mulf %82, %33 : vector<16x256xf32>
    %cst_35 = arith.constant dense<0.000000e+00> : vector<16x128xf32>
    %84 = tpu.matmul %83, %5, %cst_35 {dimension_numbers = #tpu.dot_dimension_numbers<[1], [0], [0], [1], [0, 0, 1, 1], [], []>} : vector<16x256xf32>, vector<256x128xf32>, vector<16x128xf32> -> vector<16x128xf32>
    %85 = vector.broadcast %7 : vector<1x128xf32> to vector<16x128xf32>
    %86 = arith.addf %84, %85 : vector<16x128xf32>
    %c0_36 = arith.constant 0 : index
    %c0_37 = arith.constant 0 : index
    %c0_38 = arith.constant 0 : index
    %87 = vector.load %arg10[%c0_36, %c0_37, %c0_38] : memref<2x16x128xf32, #tpu.memory_space<vmem>>, vector<1x16x128xf32>
    %88 = vector.shape_cast %87 : vector<1x16x128xf32> to vector<16x128xf32>
    %89 = vector.shape_cast %86 : vector<16x128xf32> to vector<1x16x128xf32>
    tpu.vector_store %arg10[%c0_36, %c0_37, %c0_38], %89 {strides = array<i32>} : memref<2x16x128xf32, #tpu.memory_space<vmem>>, vector<1x16x128xf32>,
    %90 = arith.mulf %49, %24 : vector<16x256xf32>
    %cst_39 = arith.constant dense<0.000000e+00> : vector<16x256xf32>
    %91 = tpu.matmul %90, %4, %cst_39 {dimension_numbers = #tpu.dot_dimension_numbers<[1], [0], [0], [1], [0, 0, 1, 1], [], []>} : vector<16x256xf32>, vector<256x256xf32>, vector<16x256xf32> -> vector<16x256xf32>
    %cst_40 = arith.constant 0.353553385 : f32
    %92 = vector.broadcast %cst_40 : f32 to vector<16x256xf32>
    %93 = arith.mulf %92, %91 : vector<16x256xf32>
    %94 = arith.mulf %49, %50 : vector<16x256xf32>
    %cst_41 = arith.constant dense<0.000000e+00> : vector<16x256xf32>
    %95 = tpu.matmul %94, %4, %cst_41 {dimension_numbers = #tpu.dot_dimension_numbers<[1], [0], [0], [1], [0, 0, 1, 1], [], []>} : vector<16x256xf32>, vector<256x256xf32>, vector<16x256xf32> -> vector<16x256xf32>
    %cst_42 = arith.constant 0.353553385 : f32
    %96 = vector.broadcast %cst_42 : f32 to vector<16x256xf32>
    %97 = arith.mulf %96, %95 : vector<16x256xf32>
    %98 = arith.maximumf %93, %97 : vector<16x256xf32>
    %cst_43 = arith.constant 0.000000e+00 : f32
    %99 = vector.broadcast %cst_43 : f32 to vector<16x256xf32>
    %cst_44 = arith.constant 0.000000e+00 : f32
    %100 = vector.broadcast %cst_44 : f32 to vector<16x256xf32>
    %101 = arith.subf %93, %98 : vector<16x256xf32>
    %102 = math.exp %101 : vector<16x256xf32>
    %103 = arith.addf %99, %102 : vector<16x256xf32>
    %104 = arith.mulf %102, %25 : vector<16x256xf32>
    %105 = arith.addf %100, %104 : vector<16x256xf32>
    %106 = arith.subf %97, %98 : vector<16x256xf32>
    %107 = math.exp %106 : vector<16x256xf32>
    %108 = arith.addf %103, %107 : vector<16x256xf32>
    %109 = arith.mulf %107, %51 : vector<16x256xf32>
    %110 = arith.addf %105, %109 : vector<16x256xf32>
    %111 = tpu.reciprocal %108 : vector<16x256xf32> -> vector<16x256xf32>
    %112 = arith.mulf %110, %111 : vector<16x256xf32>
    %113 = arith.mulf %112, %59 : vector<16x256xf32>
    %cst_45 = arith.constant dense<0.000000e+00> : vector<16x128xf32>
    %114 = tpu.matmul %113, %5, %cst_45 {dimension_numbers = #tpu.dot_dimension_numbers<[1], [0], [0], [1], [0, 0, 1, 1], [], []>} : vector<16x256xf32>, vector<256x128xf32>, vector<16x128xf32> -> vector<16x128xf32>
    %115 = vector.broadcast %7 : vector<1x128xf32> to vector<16x128xf32>
    %116 = arith.addf %114, %115 : vector<16x128xf32>
    %c1_46 = arith.constant 1 : index
    %c0_47 = arith.constant 0 : index
    %c0_48 = arith.constant 0 : index
    %117 = vector.load %arg10[%c1_46, %c0_47, %c0_48] : memref<2x16x128xf32, #tpu.memory_space<vmem>>, vector<1x16x128xf32>
    %118 = vector.shape_cast %117 : vector<1x16x128xf32> to vector<16x128xf32>
    %119 = vector.shape_cast %116 : vector<16x128xf32> to vector<1x16x128xf32>
    tpu.vector_store %arg10[%c1_46, %c0_47, %c0_48], %119 {strides = array<i32>} : memref<2x16x128xf32, #tpu.memory_space<vmem>>, vector<1x16x128xf32>,
    return
  }
  func.func @transform_0(%arg0: i32) -> (i32, i32, i32) {
    %c0_i32 = arith.constant 0 : i32
    %c0_i32_0 = arith.constant 0 : i32
    %c0_i32_1 = arith.constant 0 : i32
    return %c0_i32, %arg0, %c0_i32_0 : i32, i32, i32
  }
  func.func @transform_1(%arg0: i32) -> (i32, i32) {
    %c0_i32 = arith.constant 0 : i32
    %c0_i32_0 = arith.constant 0 : i32
    %c0_i32_1 = arith.constant 0 : i32
    return %c0_i32, %c0_i32_0 : i32, i32
  }
  func.func @transform_2(%arg0: i32) -> (i32, i32) {
    %c0_i32 = arith.constant 0 : i32
    %c0_i32_0 = arith.constant 0 : i32
    %c0_i32_1 = arith.constant 0 : i32
    return %c0_i32, %c0_i32_0 : i32, i32
  }
  func.func @transform_3(%arg0: i32) -> (i32, i32) {
    %c0_i32 = arith.constant 0 : i32
    %c0_i32_0 = arith.constant 0 : i32
    %c0_i32_1 = arith.constant 0 : i32
    return %c0_i32, %c0_i32_0 : i32, i32
  }
  func.func @transform_4(%arg0: i32) -> (i32, i32) {
    %c0_i32 = arith.constant 0 : i32
    %c0_i32_0 = arith.constant 0 : i32
    %c0_i32_1 = arith.constant 0 : i32
    return %c0_i32, %c0_i32_0 : i32, i32
  }
  func.func @transform_5(%arg0: i32) -> (i32, i32) {
    %c0_i32 = arith.constant 0 : i32
    %c0_i32_0 = arith.constant 0 : i32
    %c0_i32_1 = arith.constant 0 : i32
    return %c0_i32, %c0_i32_0 : i32, i32
  }
  func.func @transform_6(%arg0: i32) -> (i32, i32) {
    %c0_i32 = arith.constant 0 : i32
    %c0_i32_0 = arith.constant 0 : i32
    %c0_i32_1 = arith.constant 0 : i32
    return %c0_i32, %c0_i32_0 : i32, i32
  }
  func.func @transform_7(%arg0: i32) -> (i32, i32) {
    %c0_i32 = arith.constant 0 : i32
    %c0_i32_0 = arith.constant 0 : i32
    %c0_i32_1 = arith.constant 0 : i32
    return %c0_i32, %c0_i32_0 : i32, i32
  }
  func.func @transform_8(%arg0: i32) -> (i32, i32) {
    %c0_i32 = arith.constant 0 : i32
    %c0_i32_0 = arith.constant 0 : i32
    %c0_i32_1 = arith.constant 0 : i32
    return %c0_i32, %c0_i32_0 : i32, i32
  }
  func.func @transform_9(%arg0: i32) -> (i32, i32, i32) {
    %c0_i32 = arith.constant 0 : i32
    %c0_i32_0 = arith.constant 0 : i32
    %c0_i32_1 = arith.constant 0 : i32
    return %c0_i32, %arg0, %c0_i32_0 : i32, i32, i32
  }
}

</mosaic_0001>

<llo_original>
// kernel: tpu_custom_call.1
$region0: #{tpu_custom_call.1}
  #allocation0 [shape = 'u32[]', space=smem, size = 0x4, offset = 0x4, fixed_abs, tag = 'smem constant byte address 0x4 - core index']
  #allocation1 [shape = 'u32[144,128]{1,0:T(1,128)}', space=vmem, size = 0x12000, scoped, tag = 'internal scratch']
  %s0 = inlined_call_operand.hbm [shape: f32[2,16,128], index: 0, kind: input, shape index: {}]
  %s1 = inlined_call_operand.vmem [shape: f32[1,128], index: 1, kind: input, shape index: {}]
  %s2 = inlined_call_operand.hbm [shape: f32[1,128], index: 2, kind: input, shape index: {}]
  %s3 = inlined_call_operand.hbm [shape: f32[128,1024], index: 3, kind: input, shape index: {}]
  %s4 = inlined_call_operand.vmem [shape: f32[1,256], index: 4, kind: input, shape index: {}]
  %s5 = inlined_call_operand.hbm [shape: f32[256,256], index: 5, kind: input, shape index: {}]
  %s6 = inlined_call_operand.hbm [shape: f32[128,128], index: 6, kind: input, shape index: {}]
  %s7 = inlined_call_operand.hbm [shape: f32[256,128], index: 7, kind: input, shape index: {}]
  %s8 = inlined_call_operand.vmem [shape: f32[1,128], index: 8, kind: input, shape index: {}]
  %s9 = inlined_call_operand.hbm [shape: f32[2,16,128], index: 9, kind: output, shape index: {}]
  %s10 = sld [smem:[#allocation0]]
  $region70: #{tpu_custom_call.1} parent=0
    _
  %s12 = ssub.s32 1, %s10
  %s13 = scalar_select 0, %s12, %s10
  $region1: #{tpu_custom_call.1} parent=0
    #allocation2 [shape = 'u8[16384]{0}', space=vmem, size = 0x4000, scoped, tag = 'input window, operand 0, single buffered']
    #allocation3 [shape = 's32[1]{0}', space=sflag, size = 0x4, scoped, tag = 'scoped memory for tpu_custom_call.1']
    #allocation4 [shape = 's32[1]{0}', space=sflag, size = 0x4, scoped, tag = 'scoped memory for tpu_custom_call.1']
    #allocation5 [shape = 'u8[512]{0}', space=vmem, size = 0x400, scoped, tag = 'input window, operand 2, single buffered']
    #allocation6 [shape = 's32[1]{0}', space=sflag, size = 0x4, scoped, tag = 'scoped memory for tpu_custom_call.1']
    #allocation7 [shape = 'u8[524288]{0}', space=vmem, size = 0x80000, scoped, tag = 'input window, operand 3, single buffered']
    #allocation8 [shape = 'u8[262144]{0}', space=vmem, size = 0x40000, scoped, tag = 'input window, operand 5, single buffered']
    #allocation9 [shape = 's32[1]{0}', space=sflag, size = 0x4, scoped, tag = 'scoped memory for tpu_custom_call.1']
    #allocation10 [shape = 'u8[65536]{0}', space=vmem, size = 0x10000, scoped, tag = 'input window, operand 6, single buffered']
    #allocation11 [shape = 'u8[131072]{0}', space=vmem, size = 0x20000, scoped, tag = 'input window, operand 7, single buffered']
    #allocation12 [shape = 's32[1]{0}', space=sflag, size = 0x4, scoped, tag = 'scoped memory for tpu_custom_call.1']
    #allocation13 [shape = 'u8[16384]{0}', space=vmem, size = 0x4000, scoped, tag = 'output window, operand 0, single buffered']
    %14 = vsyncpa [#allocation3], 0
    %15 = vsyncpa [#allocation6], 0
    %16 = vsyncpa [#allocation9], 0
    %17 = vsyncpa [#allocation12], 0
    %18 = vsyncpa [#allocation4], 0
    // Predicated region
    $region2: #{tpu_custom_call.1} parent=1 // pred_check
      _
    $region3: #{tpu_custom_call.1} parent=1 // pred_check_branch
      %20 = sbr.rel (0) target = $region5
    $region4: #{tpu_custom_call.1} parent=1 // pred_region
      %s22 = ssub.s32 512, 512
      %23 = vsyncadd [#allocation3], %s22
      %s24 = sshll.u32 [#allocation2], 4
      %s25 = int_to_ptr.vmem [resolvable:$true] %s24
      %30 = dma.hbm_to_vmem [thread:$0]  %s0, 512, %s25, [#allocation3], 128, 128, 8
    $region5: #{tpu_custom_call.1} parent=1 // pred_fallthru
      _
    // Predicated region
    $region6: #{tpu_custom_call.1} parent=1 // pred_check
      _
    $region7: #{tpu_custom_call.1} parent=1 // pred_check_branch
      %32 = sbr.rel (0) target = $region9
    $region8: #{tpu_custom_call.1} parent=1 // pred_region
      _
    $region9: #{tpu_custom_call.1} parent=1 // pred_fallthru
      _
    // Predicated region
    $region10: #{tpu_custom_call.1} parent=1 // pred_check
      _
    $region11: #{tpu_custom_call.1} parent=1 // pred_check_branch
      %34 = sbr.rel (0) target = $region13
    $region12: #{tpu_custom_call.1} parent=1 // pred_region
      %s36 = ssub.s32 16, 16
      %37 = vsyncadd [#allocation6], %s36
      %s39 = sshll.u32 [#allocation5], 4
      %s40 = int_to_ptr.vmem [resolvable:$true] %s39
      %42 = dma.hbm_to_vmem [thread:$0]  %s2, 16, %s40, [#allocation6]
    $region13: #{tpu_custom_call.1} parent=1 // pred_fallthru
      _
    // Predicated region
    $region14: #{tpu_custom_call.1} parent=1 // pred_check
      _
    $region15: #{tpu_custom_call.1} parent=1 // pred_check_branch
      %44 = sbr.rel (0) target = $region17
    $region16: #{tpu_custom_call.1} parent=1 // pred_region
      %s46 = ssub.s32 16384, 16384
      %47 = vsyncadd [#allocation6], %s46
      %s48 = sshll.u32 [#allocation7], 4
      %s49 = int_to_ptr.vmem [resolvable:$true] %s48
      %54 = dma.hbm_to_vmem [thread:$0]  %s3, 16384, %s49, [#allocation6], 1024, 1024, 64
    $region17: #{tpu_custom_call.1} parent=1 // pred_fallthru
      _
    // Predicated region
    $region18: #{tpu_custom_call.1} parent=1 // pred_check
      _
    $region19: #{tpu_custom_call.1} parent=1 // pred_check_branch
      %56 = sbr.rel (0) target = $region21
    $region20: #{tpu_custom_call.1} parent=1 // pred_region
      _
    $region21: #{tpu_custom_call.1} parent=1 // pred_fallthru
      _
    // Predicated region
    $region22: #{tpu_custom_call.1} parent=1 // pred_check
      _
    $region23: #{tpu_custom_call.1} parent=1 // pred_check_branch
      %58 = sbr.rel (0) target = $region25
    $region24: #{tpu_custom_call.1} parent=1 // pred_region
      %s60 = ssub.s32 8192, 8192
      %61 = vsyncadd [#allocation9], %s60
      %s62 = sshll.u32 [#allocation8], 4
      %s63 = int_to_ptr.vmem [resolvable:$true] %s62
      %68 = dma.hbm_to_vmem [thread:$0]  %s5, 8192, %s63, [#allocation9], 256, 256, 16
    $region25: #{tpu_custom_call.1} parent=1 // pred_fallthru
      _
    // Predicated region
    $region26: #{tpu_custom_call.1} parent=1 // pred_check
      _
    $region27: #{tpu_custom_call.1} parent=1 // pred_check_branch
      %70 = sbr.rel (0) target = $region29
    $region28: #{tpu_custom_call.1} parent=1 // pred_region
      %s72 = ssub.s32 2048, 2048
      %73 = vsyncadd [#allocation9], %s72
      %s74 = sshll.u32 [#allocation10], 4
      %s75 = int_to_ptr.vmem [resolvable:$true] %s74
      %80 = dma.hbm_to_vmem [thread:$0]  %s6, 2048, %s75, [#allocation9], 128, 128, 8
    $region29: #{tpu_custom_call.1} parent=1 // pred_fallthru
      _
    // Predicated region
    $region30: #{tpu_custom_call.1} parent=1 // pred_check
      _
    $region31: #{tpu_custom_call.1} parent=1 // pred_check_branch
      %82 = sbr.rel (0) target = $region33
    $region32: #{tpu_custom_call.1} parent=1 // pred_region
      %s84 = ssub.s32 4096, 4096
      %85 = vsyncadd [#allocation12], %s84
      %s86 = sshll.u32 [#allocation11], 4
      %s87 = int_to_ptr.vmem [resolvable:$true] %s86
      %92 = dma.hbm_to_vmem [thread:$0]  %s7, 4096, %s87, [#allocation12], 128, 128, 8
    $region33: #{tpu_custom_call.1} parent=1 // pred_fallthru
      _
    // Predicated region
    $region34: #{tpu_custom_call.1} parent=1 // pred_check
      _
    $region35: #{tpu_custom_call.1} parent=1 // pred_check_branch
      %94 = sbr.rel (0) target = $region37
    $region36: #{tpu_custom_call.1} parent=1 // pred_region
      _
    $region37: #{tpu_custom_call.1} parent=1 // pred_fallthru
      _
    // Predicated region
    $region38: #{tpu_custom_call.1} parent=1 // pred_check
      _
    $region39: #{tpu_custom_call.1} parent=1 // pred_check_branch
      %96 = sbr.rel (0) target = $region41
    $region40: #{tpu_custom_call.1} parent=1 // pred_region
      %97 = dma.done [#allocation3], 512
    $region41: #{tpu_custom_call.1} parent=1 // pred_fallthru
      _
    // Predicated region
    $region42: #{tpu_custom_call.1} parent=1 // pred_check
      _
    $region43: #{tpu_custom_call.1} parent=1 // pred_check_branch
      %99 = sbr.rel (0) target = $region45
    $region44: #{tpu_custom_call.1} parent=1 // pred_region
      %100 = dma.done [#allocation6], 16
    $region45: #{tpu_custom_call.1} parent=1 // pred_fallthru
      _
    // Predicated region
    $region46: #{tpu_custom_call.1} parent=1 // pred_check
      _
    $region47: #{tpu_custom_call.1} parent=1 // pred_check_branch
      %102 = sbr.rel (0) target = $region49
    $region48: #{tpu_custom_call.1} parent=1 // pred_region
      %103 = dma.done [#allocation6], 16384
    $region49: #{tpu_custom_call.1} parent=1 // pred_fallthru
      _
    // Predicated region
    $region50: #{tpu_custom_call.1} parent=1 // pred_check
      _
    $region51: #{tpu_custom_call.1} parent=1 // pred_check_branch
      %105 = sbr.rel (0) target = $region53
    $region52: #{tpu_custom_call.1} parent=1 // pred_region
      %106 = dma.done [#allocation9], 8192
    $region53: #{tpu_custom_call.1} parent=1 // pred_fallthru
      _
    // Predicated region
    $region54: #{tpu_custom_call.1} parent=1 // pred_check
      _
    $region55: #{tpu_custom_call.1} parent=1 // pred_check_branch
      %108 = sbr.rel (0) target = $region57
    $region56: #{tpu_custom_call.1} parent=1 // pred_region
      %109 = dma.done [#allocation9], 2048
    $region57: #{tpu_custom_call.1} parent=1 // pred_fallthru
      _
    // Predicated region
    $region58: #{tpu_custom_call.1} parent=1 // pred_check
      _
    $region59: #{tpu_custom_call.1} parent=1 // pred_check_branch
      %111 = sbr.rel (0) target = $region61
    $region60: #{tpu_custom_call.1} parent=1 // pred_region
      %112 = dma.done [#allocation12], 4096
    $region61: #{tpu_custom_call.1} parent=1 // pred_fallthru
      _
    %v113 = vld [vmem:[%s1] sm:$0x1]
    %v114 = vld [vmem:[#allocation5] sm:$0x1]
    %v115 = vld [vmem:[#allocation10] sm:$0xff]
    %v116 = vld [vmem:[#allocation10 + $0x8] sm:$0xff]
    %v117 = vld [vmem:[#allocation10 + $0x10] sm:$0xff]
    %v118 = vld [vmem:[#allocation10 + $0x18] sm:$0xff]
    %v119 = vld [vmem:[#allocation10 + $0x20] sm:$0xff]
    %v120 = vld [vmem:[#allocation10 + $0x28] sm:$0xff]
    %v121 = vld [vmem:[#allocation10 + $0x30] sm:$0xff]
    %v122 = vld [vmem:[#allocation10 + $0x38] sm:$0xff]
    %v123 = vld [vmem:[#allocation10 + $0x40] sm:$0xff]
    %v124 = vld [vmem:[#allocation10 + $0x48] sm:$0xff]
    %v125 = vld [vmem:[#allocation10 + $0x50] sm:$0xff]
    %v126 = vld [vmem:[#allocation10 + $0x58] sm:$0xff]
    %v127 = vld [vmem:[#allocation10 + $0x60] sm:$0xff]
    %v128 = vld [vmem:[#allocation10 + $0x68] sm:$0xff]
    %v129 = vld [vmem:[#allocation10 + $0x70] sm:$0xff]
    %v130 = vld [vmem:[#allocation10 + $0x78] sm:$0xff]
    %v131 = vld [vmem:[#allocation7] sm:$0xff]
    %v132 = vld [vmem:[#allocation7 + $0x8] sm:$0xff]
    %v133 = vld [vmem:[#allocation7 + $0x10] sm:$0xff]
    %v134 = vld [vmem:[#allocation7 + $0x18] sm:$0xff]
    %v135 = vld [vmem:[#allocation7 + $0x20] sm:$0xff]
    %v136 = vld [vmem:[#allocation7 + $0x28] sm:$0xff]
    %v137 = vld [vmem:[#allocation7 + $0x30] sm:$0xff]
    %v138 = vld [vmem:[#allocation7 + $0x38] sm:$0xff]
    %v139 = vld [vmem:[#allocation7 + $0x40] sm:$0xff]
    %v140 = vld [vmem:[#allocation7 + $0x48] sm:$0xff]
    %v141 = vld [vmem:[#allocation7 + $0x50] sm:$0xff]
    %v142 = vld [vmem:[#allocation7 + $0x58] sm:$0xff]
    %v143 = vld [vmem:[#allocation7 + $0x60] sm:$0xff]
    %v144 = vld [vmem:[#allocation7 + $0x68] sm:$0xff]
    %v145 = vld [vmem:[#allocation7 + $0x70] sm:$0xff]
    %v146 = vld [vmem:[#allocation7 + $0x78] sm:$0xff]
    %v147 = vld [vmem:[#allocation7 + $0x80] sm:$0xff]
    %v148 = vld [vmem:[#allocation7 + $0x88] sm:$0xff]
    %v149 = vld [vmem:[#allocation7 + $0x90] sm:$0xff]
    %v150 = vld [vmem:[#allocation7 + $0x98] sm:$0xff]
    %v151 = vld [vmem:[#allocation7 + $0xa0] sm:$0xff]
    %v152 = vld [vmem:[#allocation7 + $0xa8] sm:$0xff]
    %v153 = vld [vmem:[#allocation7 + $0xb0] sm:$0xff]
    %v154 = vld [vmem:[#allocation7 + $0xb8] sm:$0xff]
    %v155 = vld [vmem:[#allocation7 + $0xc0] sm:$0xff]
    %v156 = vld [vmem:[#allocation7 + $0xc8] sm:$0xff]
    %v157 = vld [vmem:[#allocation7 + $0xd0] sm:$0xff]
    %v158 = vld [vmem:[#allocation7 + $0xd8] sm:$0xff]
    %v159 = vld [vmem:[#allocation7 + $0xe0] sm:$0xff]
    %v160 = vld [vmem:[#allocation7 + $0xe8] sm:$0xff]
    %v161 = vld [vmem:[#allocation7 + $0xf0] sm:$0xff]
    %v162 = vld [vmem:[#allocation7 + $0xf8] sm:$0xff]
    %v163 = vld [vmem:[#allocation7 + $0x100] sm:$0xff]
    %v164 = vld [vmem:[#allocation7 + $0x108] sm:$0xff]
    %v165 = vld [vmem:[#allocation7 + $0x110] sm:$0xff]
    %v166 = vld [vmem:[#allocation7 + $0x118] sm:$0xff]
    %v167 = vld [vmem:[#allocation7 + $0x120] sm:$0xff]
    %v168 = vld [vmem:[#allocation7 + $0x128] sm:$0xff]
    %v169 = vld [vmem:[#allocation7 + $0x130] sm:$0xff]
    %v170 = vld [vmem:[#allocation7 + $0x138] sm:$0xff]
    %v171 = vld [vmem:[#allocation7 + $0x140] sm:$0xff]
    %v172 = vld [vmem:[#allocation7 + $0x148] sm:$0xff]
    %v173 = vld [vmem:[#allocation7 + $0x150] sm:$0xff]
    %v174 = vld [vmem:[#allocation7 + $0x158] sm:$0xff]
    %v175 = vld [vmem:[#allocation7 + $0x160] sm:$0xff]
    %v176 = vld [vmem:[#allocation7 + $0x168] sm:$0xff]
    %v177 = vld [vmem:[#allocation7 + $0x170] sm:$0xff]
    %v178 = vld [vmem:[#allocation7 + $0x178] sm:$0xff]
    %v179 = vld [vmem:[#allocation7 + $0x180] sm:$0xff]
    %v180 = vld [vmem:[#allocation7 + $0x188] sm:$0xff]
    %v181 = vld [vmem:[#allocation7 + $0x190] sm:$0xff]
    %v182 = vld [vmem:[#allocation7 + $0x198] sm:$0xff]
    %v183 = vld [vmem:[#allocation7 + $0x1a0] sm:$0xff]
    %v184 = vld [vmem:[#allocation7 + $0x1a8] sm:$0xff]
    %v185 = vld [vmem:[#allocation7 + $0x1b0] sm:$0xff]
    %v186 = vld [vmem:[#allocation7 + $0x1b8] sm:$0xff]
    %v187 = vld [vmem:[#allocation7 + $0x1c0] sm:$0xff]
    %v188 = vld [vmem:[#allocation7 + $0x1c8] sm:$0xff]
    %v189 = vld [vmem:[#allocation7 + $0x1d0] sm:$0xff]
    %v190 = vld [vmem:[#allocation7 + $0x1d8] sm:$0xff]
    %v191 = vld [vmem:[#allocation7 + $0x1e0] sm:$0xff]
    %v192 = vld [vmem:[#allocation7 + $0x1e8] sm:$0xff]
    %v193 = vld [vmem:[#allocation7 + $0x1f0] sm:$0xff]
    %v194 = vld [vmem:[#allocation7 + $0x1f8] sm:$0xff]
    %v195 = vld [vmem:[#allocation7 + $0x200] sm:$0xff]
    %v196 = vld [vmem:[#allocation7 + $0x208] sm:$0xff]
    %v197 = vld [vmem:[#allocation7 + $0x210] sm:$0xff]
    %v198 = vld [vmem:[#allocation7 + $0x218] sm:$0xff]
    %v199 = vld [vmem:[#allocation7 + $0x220] sm:$0xff]
    %v200 = vld [vmem:[#allocation7 + $0x228] sm:$0xff]
    %v201 = vld [vmem:[#allocation7 + $0x230] sm:$0xff]
    %v202 = vld [vmem:[#allocation7 + $0x238] sm:$0xff]
    %v203 = vld [vmem:[#allocation7 + $0x240] sm:$0xff]
    %v204 = vld [vmem:[#allocation7 + $0x248] sm:$0xff]
    %v205 = vld [vmem:[#allocation7 + $0x250] sm:$0xff]
    %v206 = vld [vmem:[#allocation7 + $0x258] sm:$0xff]
    %v207 = vld [vmem:[#allocation7 + $0x260] sm:$0xff]
    %v208 = vld [vmem:[#allocation7 + $0x268] sm:$0xff]
    %v209 = vld [vmem:[#allocation7 + $0x270] sm:$0xff]
    %v210 = vld [vmem:[#allocation7 + $0x278] sm:$0xff]
    %v211 = vld [vmem:[#allocation7 + $0x280] sm:$0xff]
    %v212 = vld [vmem:[#allocation7 + $0x288] sm:$0xff]
    %v213 = vld [vmem:[#allocation7 + $0x290] sm:$0xff]
    %v214 = vld [vmem:[#allocation7 + $0x298] sm:$0xff]
    %v215 = vld [vmem:[#allocation7 + $0x2a0] sm:$0xff]
    %v216 = vld [vmem:[#allocation7 + $0x2a8] sm:$0xff]
    %v217 = vld [vmem:[#allocation7 + $0x2b0] sm:$0xff]
    %v218 = vld [vmem:[#allocation7 + $0x2b8] sm:$0xff]
    %v219 = vld [vmem:[#allocation7 + $0x2c0] sm:$0xff]
    %v220 = vld [vmem:[#allocation7 + $0x2c8] sm:$0xff]
    %v221 = vld [vmem:[#allocation7 + $0x2d0] sm:$0xff]
    %v222 = vld [vmem:[#allocation7 + $0x2d8] sm:$0xff]
    %v223 = vld [vmem:[#allocation7 + $0x2e0] sm:$0xff]
    %v224 = vld [vmem:[#allocation7 + $0x2e8] sm:$0xff]
    %v225 = vld [vmem:[#allocation7 + $0x2f0] sm:$0xff]
    %v226 = vld [vmem:[#allocation7 + $0x2f8] sm:$0xff]
    %v227 = vld [vmem:[#allocation7 + $0x300] sm:$0xff]
    %v228 = vld [vmem:[#allocation7 + $0x308] sm:$0xff]
    %v229 = vld [vmem:[#allocation7 + $0x310] sm:$0xff]
    %v230 = vld [vmem:[#allocation7 + $0x318] sm:$0xff]
    %v231 = vld [vmem:[#allocation7 + $0x320] sm:$0xff]
    %v232 = vld [vmem:[#allocation7 + $0x328] sm:$0xff]
    %v233 = vld [vmem:[#allocation7 + $0x330] sm:$0xff]
    %v234 = vld [vmem:[#allocation7 + $0x338] sm:$0xff]
    %v235 = vld [vmem:[#allocation7 + $0x340] sm:$0xff]
    %v236 = vld [vmem:[#allocation7 + $0x348] sm:$0xff]
    %v237 = vld [vmem:[#allocation7 + $0x350] sm:$0xff]
    %v238 = vld [vmem:[#allocation7 + $0x358] sm:$0xff]
    %v239 = vld [vmem:[#allocation7 + $0x360] sm:$0xff]
    %v240 = vld [vmem:[#allocation7 + $0x368] sm:$0xff]
    %v241 = vld [vmem:[#allocation7 + $0x370] sm:$0xff]
    %v242 = vld [vmem:[#allocation7 + $0x378] sm:$0xff]
    %v243 = vld [vmem:[#allocation7 + $0x380] sm:$0xff]
    %v244 = vld [vmem:[#allocation7 + $0x388] sm:$0xff]
    %v245 = vld [vmem:[#allocation7 + $0x390] sm:$0xff]
    %v246 = vld [vmem:[#allocation7 + $0x398] sm:$0xff]
    %v247 = vld [vmem:[#allocation7 + $0x3a0] sm:$0xff]
    %v248 = vld [vmem:[#allocation7 + $0x3a8] sm:$0xff]
    %v249 = vld [vmem:[#allocation7 + $0x3b0] sm:$0xff]
    %v250 = vld [vmem:[#allocation7 + $0x3b8] sm:$0xff]
    %v251 = vld [vmem:[#allocation7 + $0x3c0] sm:$0xff]
    %v252 = vld [vmem:[#allocation7 + $0x3c8] sm:$0xff]
    %v253 = vld [vmem:[#allocation7 + $0x3d0] sm:$0xff]
    %v254 = vld [vmem:[#allocation7 + $0x3d8] sm:$0xff]
    %v255 = vld [vmem:[#allocation7 + $0x3e0] sm:$0xff]
    %v256 = vld [vmem:[#allocation7 + $0x3e8] sm:$0xff]
    %v257 = vld [vmem:[#allocation7 + $0x3f0] sm:$0xff]
    %v258 = vld [vmem:[#allocation7 + $0x3f8] sm:$0xff]
    %v259 = vld [vmem:[#allocation8] sm:$0xff]
    %v260 = vld [vmem:[#allocation8 + $0x8] sm:$0xff]
    %v261 = vld [vmem:[#allocation8 + $0x10] sm:$0xff]
    %v262 = vld [vmem:[#allocation8 + $0x18] sm:$0xff]
    %v263 = vld [vmem:[#allocation8 + $0x20] sm:$0xff]
    %v264 = vld [vmem:[#allocation8 + $0x28] sm:$0xff]
    %v265 = vld [vmem:[#allocation8 + $0x30] sm:$0xff]
    %v266 = vld [vmem:[#allocation8 + $0x38] sm:$0xff]
    %v267 = vld [vmem:[#allocation8 + $0x40] sm:$0xff]
    %v268 = vld [vmem:[#allocation8 + $0x48] sm:$0xff]
    %v269 = vld [vmem:[#allocation8 + $0x50] sm:$0xff]
    %v270 = vld [vmem:[#allocation8 + $0x58] sm:$0xff]
    %v271 = vld [vmem:[#allocation8 + $0x60] sm:$0xff]
    %v272 = vld [vmem:[#allocation8 + $0x68] sm:$0xff]
    %v273 = vld [vmem:[#allocation8 + $0x70] sm:$0xff]
    %v274 = vld [vmem:[#allocation8 + $0x78] sm:$0xff]
    %v275 = vld [vmem:[#allocation8 + $0x80] sm:$0xff]
    %v276 = vld [vmem:[#allocation8 + $0x88] sm:$0xff]
    %v277 = vld [vmem:[#allocation8 + $0x90] sm:$0xff]
    %v278 = vld [vmem:[#allocation8 + $0x98] sm:$0xff]
    %v279 = vld [vmem:[#allocation8 + $0xa0] sm:$0xff]
    %v280 = vld [vmem:[#allocation8 + $0xa8] sm:$0xff]
    %v281 = vld [vmem:[#allocation8 + $0xb0] sm:$0xff]
    %v282 = vld [vmem:[#allocation8 + $0xb8] sm:$0xff]
    %v283 = vld [vmem:[#allocation8 + $0xc0] sm:$0xff]
    %v284 = vld [vmem:[#allocation8 + $0xc8] sm:$0xff]
    %v285 = vld [vmem:[#allocation8 + $0xd0] sm:$0xff]
    %v286 = vld [vmem:[#allocation8 + $0xd8] sm:$0xff]
    %v287 = vld [vmem:[#allocation8 + $0xe0] sm:$0xff]
    %v288 = vld [vmem:[#allocation8 + $0xe8] sm:$0xff]
    %v289 = vld [vmem:[#allocation8 + $0xf0] sm:$0xff]
    %v290 = vld [vmem:[#allocation8 + $0xf8] sm:$0xff]
    %v291 = vld [vmem:[#allocation8 + $0x100] sm:$0xff]
    %v292 = vld [vmem:[#allocation8 + $0x108] sm:$0xff]
    %v293 = vld [vmem:[#allocation8 + $0x110] sm:$0xff]
    %v294 = vld [vmem:[#allocation8 + $0x118] sm:$0xff]
    %v295 = vld [vmem:[#allocation8 + $0x120] sm:$0xff]
    %v296 = vld [vmem:[#allocation8 + $0x128] sm:$0xff]
    %v297 = vld [vmem:[#allocation8 + $0x130] sm:$0xff]
    %v298 = vld [vmem:[#allocation8 + $0x138] sm:$0xff]
    %v299 = vld [vmem:[#allocation8 + $0x140] sm:$0xff]
    %v300 = vld [vmem:[#allocation8 + $0x148] sm:$0xff]
    %v301 = vld [vmem:[#allocation8 + $0x150] sm:$0xff]
    %v302 = vld [vmem:[#allocation8 + $0x158] sm:$0xff]
    %v303 = vld [vmem:[#allocation8 + $0x160] sm:$0xff]
    %v304 = vld [vmem:[#allocation8 + $0x168] sm:$0xff]
    %v305 = vld [vmem:[#allocation8 + $0x170] sm:$0xff]
    %v306 = vld [vmem:[#allocation8 + $0x178] sm:$0xff]
    %v307 = vld [vmem:[#allocation8 + $0x180] sm:$0xff]
    %v308 = vld [vmem:[#allocation8 + $0x188] sm:$0xff]
    %v309 = vld [vmem:[#allocation8 + $0x190] sm:$0xff]
    %v310 = vld [vmem:[#allocation8 + $0x198] sm:$0xff]
    %v311 = vld [vmem:[#allocation8 + $0x1a0] sm:$0xff]
    %v312 = vld [vmem:[#allocation8 + $0x1a8] sm:$0xff]
    %v313 = vld [vmem:[#allocation8 + $0x1b0] sm:$0xff]
    %v314 = vld [vmem:[#allocation8 + $0x1b8] sm:$0xff]
    %v315 = vld [vmem:[#allocation8 + $0x1c0] sm:$0xff]
    %v316 = vld [vmem:[#allocation8 + $0x1c8] sm:$0xff]
    %v317 = vld [vmem:[#allocation8 + $0x1d0] sm:$0xff]
    %v318 = vld [vmem:[#allocation8 + $0x1d8] sm:$0xff]
    %v319 = vld [vmem:[#allocation8 + $0x1e0] sm:$0xff]
    %v320 = vld [vmem:[#allocation8 + $0x1e8] sm:$0xff]
    %v321 = vld [vmem:[#allocation8 + $0x1f0] sm:$0xff]
    %v322 = vld [vmem:[#allocation8 + $0x1f8] sm:$0xff]
    %v323 = vld [vmem:[#allocation11] sm:$0xff]
    %v324 = vld [vmem:[#allocation11 + $0x8] sm:$0xff]
    %v325 = vld [vmem:[#allocation11 + $0x10] sm:$0xff]
    %v326 = vld [vmem:[#allocation11 + $0x18] sm:$0xff]
    %v327 = vld [vmem:[#allocation11 + $0x20] sm:$0xff]
    %v328 = vld [vmem:[#allocation11 + $0x28] sm:$0xff]
    %v329 = vld [vmem:[#allocation11 + $0x30] sm:$0xff]
    %v330 = vld [vmem:[#allocation11 + $0x38] sm:$0xff]
    %v331 = vld [vmem:[#allocation11 + $0x40] sm:$0xff]
    %v332 = vld [vmem:[#allocation11 + $0x48] sm:$0xff]
    %v333 = vld [vmem:[#allocation11 + $0x50] sm:$0xff]
    %v334 = vld [vmem:[#allocation11 + $0x58] sm:$0xff]
    %v335 = vld [vmem:[#allocation11 + $0x60] sm:$0xff]
    %v336 = vld [vmem:[#allocation11 + $0x68] sm:$0xff]
    %v337 = vld [vmem:[#allocation11 + $0x70] sm:$0xff]
    %v338 = vld [vmem:[#allocation11 + $0x78] sm:$0xff]
    %v339 = vld [vmem:[#allocation11 + $0x80] sm:$0xff]
    %v340 = vld [vmem:[#allocation11 + $0x88] sm:$0xff]
    %v341 = vld [vmem:[#allocation11 + $0x90] sm:$0xff]
    %v342 = vld [vmem:[#allocation11 + $0x98] sm:$0xff]
    %v343 = vld [vmem:[#allocation11 + $0xa0] sm:$0xff]
    %v344 = vld [vmem:[#allocation11 + $0xa8] sm:$0xff]
    %v345 = vld [vmem:[#allocation11 + $0xb0] sm:$0xff]
    %v346 = vld [vmem:[#allocation11 + $0xb8] sm:$0xff]
    %v347 = vld [vmem:[#allocation11 + $0xc0] sm:$0xff]
    %v348 = vld [vmem:[#allocation11 + $0xc8] sm:$0xff]
    %v349 = vld [vmem:[#allocation11 + $0xd0] sm:$0xff]
    %v350 = vld [vmem:[#allocation11 + $0xd8] sm:$0xff]
    %v351 = vld [vmem:[#allocation11 + $0xe0] sm:$0xff]
    %v352 = vld [vmem:[#allocation11 + $0xe8] sm:$0xff]
    %v353 = vld [vmem:[#allocation11 + $0xf0] sm:$0xff]
    %v354 = vld [vmem:[#allocation11 + $0xf8] sm:$0xff]
    %v355 = vld [vmem:[%s4] sm:$0x3]
    %v356 = vld [vmem:[%s8] sm:$0x1]
    %v357 = vld [vmem:[#allocation2] sm:$0xff]
    %v358 = vld [vmem:[#allocation2 + $0x8] sm:$0xff]
    %359 = vmatprep.subr.mxu0 0.0
    %360 = vmatpush1.msra.mxu0 %v130
    %361 = vmatprep.subr.mxu0 0.0
    %362 = vmatpush1.msra.mxu0 %v129
    %363 = vmatprep.subr.mxu0 0.0
    %364 = vmatpush1.msra.mxu0 %v128
    %365 = vmatprep.subr.mxu0 0.0
    %366 = vmatpush1.msra.mxu0 %v127
    %367 = vmatprep.subr.mxu0 0.0
    %368 = vmatpush1.msra.mxu0 %v126
    %369 = vmatprep.subr.mxu0 0.0
    %370 = vmatpush1.msra.mxu0 %v125
    %371 = vmatprep.subr.mxu0 0.0
    %372 = vmatpush1.msra.mxu0 %v124
    %373 = vmatprep.subr.mxu0 0.0
    %374 = vmatpush1.msra.mxu0 %v123
    %375 = vmatprep.subr.mxu0 0.0
    %376 = vmatpush1.msra.mxu0 %v122
    %377 = vmatprep.subr.mxu0 0.0
    %378 = vmatpush1.msra.mxu0 %v121
    %379 = vmatprep.subr.mxu0 0.0
    %380 = vmatpush1.msra.mxu0 %v120
    %381 = vmatprep.subr.mxu0 0.0
    %382 = vmatpush1.msra.mxu0 %v119
    %383 = vmatprep.subr.mxu0 0.0
    %384 = vmatpush1.msra.mxu0 %v118
    %385 = vmatprep.subr.mxu0 0.0
    %386 = vmatpush1.msra.mxu0 %v117
    %387 = vmatprep.subr.mxu0 0.0
    %388 = vmatpush1.msra.mxu0 %v116
    %389 = vmatprep.subr.mxu0 0.0
    %390 = vmatpush1.msra.mxu0 %v115
    %391 = vmatprep.subr.mxu0 0.0
    %392 = vmatpush2.msra.mxu0 0.0
    %393 = vmatprep.subr.mxu0 0.0
    %394 = vmatpush2.msra.mxu0 0.0
    %395 = vmatprep.subr.mxu0 0.0
    %396 = vmatpush2.msra.mxu0 0.0
    %397 = vmatprep.subr.mxu0 0.0
    %398 = vmatpush2.msra.mxu0 0.0
    %399 = vmatprep.subr.mxu0 0.0
    %400 = vmatpush2.msra.mxu0 0.0
    %401 = vmatprep.subr.mxu0 0.0
    %402 = vmatpush2.msra.mxu0 0.0
    %403 = vmatprep.subr.mxu0 0.0
    %404 = vmatpush2.msra.mxu0 0.0
    %405 = vmatprep.subr.mxu0 0.0
    %406 = vmatpush2.msra.mxu0 0.0
    %407 = vmatprep.subr.mxu0 0.0
    %408 = vmatpush2.msra.mxu0 0.0
    %409 = vmatprep.subr.mxu0 0.0
    %410 = vmatpush2.msra.mxu0 0.0
    %411 = vmatprep.subr.mxu0 0.0
    %412 = vmatpush2.msra.mxu0 0.0
    %413 = vmatprep.subr.mxu0 0.0
    %414 = vmatpush2.msra.mxu0 0.0
    %415 = vmatprep.subr.mxu0 0.0
    %416 = vmatpush2.msra.mxu0 0.0
    %417 = vmatprep.subr.mxu0 0.0
    %418 = vmatpush2.msra.mxu0 0.0
    %419 = vmatprep.subr.mxu0 0.0
    %420 = vmatpush2.msra.mxu0 0.0
    %421 = vmatprep.subr.mxu0 0.0
    %422 = vmatpush2.msra.mxu0 0.0
    %423 = vmatprep.mubr.f32.mxu0 0.0
    %424 = vmatmul.mubr.f32.gmra.mxu0 %v357
    %v425 = vpop.f32.mrf.mxu0
    %v426 = vadd.f32 0.0, %v425
    %v427 = vpop.f32.mrf.mxu0
    %428 = vmatprep.mubr.f32.mxu0 0.0
    %429 = vmatmul.mubr.f32.gmra.mxu0 %v358
    %v430 = vpop.f32.mrf.mxu0
    %v431 = vadd.f32 0.0, %v430
    %v432 = vpop.f32.mrf.mxu0
    %433 = vdwg.mxu0
    %v434 = vsub.f32 %v357, %v426
    %v435 = vsub.f32 %v358, %v431
    %v436 = vmul.f32 %v434, %v434
    %v437 = vmul.f32 %v435, %v435
    %438 = vmatprep.subr.mxu0 0.0
    %439 = vmatpush1.msra.mxu0 %v130
    %440 = vmatprep.subr.mxu0 0.0
    %441 = vmatpush1.msra.mxu0 %v129
    %442 = vmatprep.subr.mxu0 0.0
    %443 = vmatpush1.msra.mxu0 %v128
    %444 = vmatprep.subr.mxu0 0.0
    %445 = vmatpush1.msra.mxu0 %v127
    %446 = vmatprep.subr.mxu0 0.0
    %447 = vmatpush1.msra.mxu0 %v126
    %448 = vmatprep.subr.mxu0 0.0
    %449 = vmatpush1.msra.mxu0 %v125
    %450 = vmatprep.subr.mxu0 0.0
    %451 = vmatpush1.msra.mxu0 %v124
    %452 = vmatprep.subr.mxu0 0.0
    %453 = vmatpush1.msra.mxu0 %v123
    %454 = vmatprep.subr.mxu0 0.0
    %455 = vmatpush1.msra.mxu0 %v122
    %456 = vmatprep.subr.mxu0 0.0
    %457 = vmatpush1.msra.mxu0 %v121
    %458 = vmatprep.subr.mxu0 0.0
    %459 = vmatpush1.msra.mxu0 %v120
    %460 = vmatprep.subr.mxu0 0.0
    %461 = vmatpush1.msra.mxu0 %v119
    %462 = vmatprep.subr.mxu0 0.0
    %463 = vmatpush1.msra.mxu0 %v118
    %464 = vmatprep.subr.mxu0 0.0
    %465 = vmatpush1.msra.mxu0 %v117
    %466 = vmatprep.subr.mxu0 0.0
    %467 = vmatpush1.msra.mxu0 %v116
    %468 = vmatprep.subr.mxu0 0.0
    %469 = vmatpush1.msra.mxu0 %v115
    %470 = vmatprep.subr.mxu0 0.0
    %471 = vmatpush2.msra.mxu0 0.0
    %472 = vmatprep.subr.mxu0 0.0
    %473 = vmatpush2.msra.mxu0 0.0
    %474 = vmatprep.subr.mxu0 0.0
    %475 = vmatpush2.msra.mxu0 0.0
    %476 = vmatprep.subr.mxu0 0.0
    %477 = vmatpush2.msra.mxu0 0.0
    %478 = vmatprep.subr.mxu0 0.0
    %479 = vmatpush2.msra.mxu0 0.0
    %480 = vmatprep.subr.mxu0 0.0
    %481 = vmatpush2.msra.mxu0 0.0
    %482 = vmatprep.subr.mxu0 0.0
    %483 = vmatpush2.msra.mxu0 0.0
    %484 = vmatprep.subr.mxu0 0.0
    %485 = vmatpush2.msra.mxu0 0.0
    %486 = vmatprep.subr.mxu0 0.0
    %487 = vmatpush2.msra.mxu0 0.0
    %488 = vmatprep.subr.mxu0 0.0
    %489 = vmatpush2.msra.mxu0 0.0
    %490 = vmatprep.subr.mxu0 0.0
    %491 = vmatpush2.msra.mxu0 0.0
    %492 = vmatprep.subr.mxu0 0.0
    %493 = vmatpush2.msra.mxu0 0.0
    %494 = vmatprep.subr.mxu0 0.0
    %495 = vmatpush2.msra.mxu0 0.0
    %496 = vmatprep.subr.mxu0 0.0
    %497 = vmatpush2.msra.mxu0 0.0
    %498 = vmatprep.subr.mxu0 0.0
    %499 = vmatpush2.msra.mxu0 0.0
    %500 = vmatprep.subr.mxu0 0.0
    %501 = vmatpush2.msra.mxu0 0.0
    %502 = vmatprep.mubr.f32.mxu0 0.0
    %503 = vmatmul.mubr.f32.gmra.mxu0 %v436
    %v504 = vpop.f32.mrf.mxu0
    %v505 = vadd.f32 1e-05, %v504
    %v506 = vpop.f32.mrf.mxu0
    %507 = vmatprep.mubr.f32.mxu0 0.0
    %508 = vmatmul.mubr.f32.gmra.mxu0 %v437
    %v509 = vpop.f32.mrf.mxu0
    %v510 = vadd.f32 1e-05, %v509
    %v511 = vpop.f32.mrf.mxu0
    %512 = vdwg.mxu0
    %v513 = vrsqrt.pop %v505
    %v514 = vrsqrt.pop %v510
    %v515 = vmul.f32 %v434, %v513
    %v516 = vmul.f32 %v435, %v514
    %v518 = vlaneseq
    %v519 = vshrl.u32 %v518, 7
    %v520 = vsub.s32 0, %v519
    %v521 = vrot.slane %v113, %v520
    %v523 = vmul.f32 %v515, %v521
    %v524 = vmul.f32 %v516, %v521
    %v526 = vlaneseq
    %v527 = vshrl.u32 %v526, 7
    %v528 = vsub.s32 0, %v527
    %v529 = vrot.slane %v114, %v528
    %v531 = vadd.f32 %v523, %v529
    %v532 = vadd.f32 %v524, %v529
    %533 = vmatprep.subr.mxu0 %v252
    %534 = vmatpush1.msra.mxu0 %v251
    %535 = vmatprep.subr.mxu0 %v244
    %536 = vmatpush1.msra.mxu0 %v243
    %537 = vmatprep.subr.mxu0 %v236
    %538 = vmatpush1.msra.mxu0 %v235
    %539 = vmatprep.subr.mxu0 %v228
    %540 = vmatpush1.msra.mxu0 %v227
    %541 = vmatprep.subr.mxu0 %v220
    %542 = vmatpush1.msra.mxu0 %v219
    %543 = vmatprep.subr.mxu0 %v212
    %544 = vmatpush1.msra.mxu0 %v211
    %545 = vmatprep.subr.mxu0 %v204
    %546 = vmatpush1.msra.mxu0 %v203
    %547 = vmatprep.subr.mxu0 %v196
    %548 = vmatpush1.msra.mxu0 %v195
    %549 = vmatprep.subr.mxu0 %v188
    %550 = vmatpush1.msra.mxu0 %v187
    %551 = vmatprep.subr.mxu0 %v180
    %552 = vmatpush1.msra.mxu0 %v179
    %553 = vmatprep.subr.mxu0 %v172
    %554 = vmatpush1.msra.mxu0 %v171
    %555 = vmatprep.subr.mxu0 %v164
    %556 = vmatpush1.msra.mxu0 %v163
    %557 = vmatprep.subr.mxu0 %v156
    %558 = vmatpush1.msra.mxu0 %v155
    %559 = vmatprep.subr.mxu0 %v148
    %560 = vmatpush1.msra.mxu0 %v147
    %561 = vmatprep.subr.mxu0 %v140
    %562 = vmatpush1.msra.mxu0 %v139
    %563 = vmatprep.subr.mxu0 %v132
    %564 = vmatpush1.msra.mxu0 %v131
    %565 = vmatprep.subr.mxu0 0.0
    %566 = vmatpush2.msra.mxu0 0.0
    %567 = vmatprep.subr.mxu0 0.0
    %568 = vmatpush2.msra.mxu0 0.0
    %569 = vmatprep.subr.mxu0 0.0
    %570 = vmatpush2.msra.mxu0 0.0
    %571 = vmatprep.subr.mxu0 0.0
    %572 = vmatpush2.msra.mxu0 0.0
    %573 = vmatprep.subr.mxu0 0.0
    %574 = vmatpush2.msra.mxu0 0.0
    %575 = vmatprep.subr.mxu0 0.0
    %576 = vmatpush2.msra.mxu0 0.0
    %577 = vmatprep.subr.mxu0 0.0
    %578 = vmatpush2.msra.mxu0 0.0
    %579 = vmatprep.subr.mxu0 0.0
    %580 = vmatpush2.msra.mxu0 0.0
    %581 = vmatprep.subr.mxu0 0.0
    %582 = vmatpush2.msra.mxu0 0.0
    %583 = vmatprep.subr.mxu0 0.0
    %584 = vmatpush2.msra.mxu0 0.0
    %585 = vmatprep.subr.mxu0 0.0
    %586 = vmatpush2.msra.mxu0 0.0
    %587 = vmatprep.subr.mxu0 0.0
    %588 = vmatpush2.msra.mxu0 0.0
    %589 = vmatprep.subr.mxu0 0.0
    %590 = vmatpush2.msra.mxu0 0.0
    %591 = vmatprep.subr.mxu0 0.0
    %592 = vmatpush2.msra.mxu0 0.0
    %593 = vmatprep.subr.mxu0 0.0
    %594 = vmatpush2.msra.mxu0 0.0
    %595 = vmatprep.subr.mxu0 0.0
    %596 = vmatpush2.msra.mxu0 0.0
    %597 = vmatprep.mubr.f32.mxu0 0.0
    %598 = vmatmul.mubr.f32.gmra.mxu0 %v531
    %v599 = vpop.f32.mrf.mxu0
    %v600 = vadd.f32 0.0, %v599
    %v601 = vpop.f32.mrf.mxu0
    %v602 = vadd.f32 0.0, %v601
    %603 = vmatprep.mubr.f32.mxu0 0.0
    %604 = vmatmul.mubr.f32.gmra.mxu0 %v532
    %v605 = vpop.f32.mrf.mxu0
    %v606 = vadd.f32 0.0, %v605
    %v607 = vpop.f32.mrf.mxu0
    %v608 = vadd.f32 0.0, %v607
    %609 = vdwg.mxu0
    %610 = vmatprep.subr.mxu0 %v254
    %611 = vmatpush1.msra.mxu0 %v253
    %612 = vmatprep.subr.mxu0 %v246
    %613 = vmatpush1.msra.mxu0 %v245
    %614 = vmatprep.subr.mxu0 %v238
    %615 = vmatpush1.msra.mxu0 %v237
    %616 = vmatprep.subr.mxu0 %v230
    %617 = vmatpush1.msra.mxu0 %v229
    %618 = vmatprep.subr.mxu0 %v222
    %619 = vmatpush1.msra.mxu0 %v221
    %620 = vmatprep.subr.mxu0 %v214
    %621 = vmatpush1.msra.mxu0 %v213
    %622 = vmatprep.subr.mxu0 %v206
    %623 = vmatpush1.msra.mxu0 %v205
    %624 = vmatprep.subr.mxu0 %v198
    %625 = vmatpush1.msra.mxu0 %v197
    %626 = vmatprep.subr.mxu0 %v190
    %627 = vmatpush1.msra.mxu0 %v189
    %628 = vmatprep.subr.mxu0 %v182
    %629 = vmatpush1.msra.mxu0 %v181
    %630 = vmatprep.subr.mxu0 %v174
    %631 = vmatpush1.msra.mxu0 %v173
    %632 = vmatprep.subr.mxu0 %v166
    %633 = vmatpush1.msra.mxu0 %v165
    %634 = vmatprep.subr.mxu0 %v158
    %635 = vmatpush1.msra.mxu0 %v157
    %636 = vmatprep.subr.mxu0 %v150
    %637 = vmatpush1.msra.mxu0 %v149
    %638 = vmatprep.subr.mxu0 %v142
    %639 = vmatpush1.msra.mxu0 %v141
    %640 = vmatprep.subr.mxu0 %v134
    %641 = vmatpush1.msra.mxu0 %v133
    %642 = vmatprep.subr.mxu0 0.0
    %643 = vmatpush2.msra.mxu0 0.0
    %644 = vmatprep.subr.mxu0 0.0
    %645 = vmatpush2.msra.mxu0 0.0
    %646 = vmatprep.subr.mxu0 0.0
    %647 = vmatpush2.msra.mxu0 0.0
    %648 = vmatprep.subr.mxu0 0.0
    %649 = vmatpush2.msra.mxu0 0.0
    %650 = vmatprep.subr.mxu0 0.0
    %651 = vmatpush2.msra.mxu0 0.0
    %652 = vmatprep.subr.mxu0 0.0
    %653 = vmatpush2.msra.mxu0 0.0
    %654 = vmatprep.subr.mxu0 0.0
    %655 = vmatpush2.msra.mxu0 0.0
    %656 = vmatprep.subr.mxu0 0.0
    %657 = vmatpush2.msra.mxu0 0.0
    %658 = vmatprep.subr.mxu0 0.0
    %659 = vmatpush2.msra.mxu0 0.0
    %660 = vmatprep.subr.mxu0 0.0
    %661 = vmatpush2.msra.mxu0 0.0
    %662 = vmatprep.subr.mxu0 0.0
    %663 = vmatpush2.msra.mxu0 0.0
    %664 = vmatprep.subr.mxu0 0.0
    %665 = vmatpush2.msra.mxu0 0.0
    %666 = vmatprep.subr.mxu0 0.0
    %667 = vmatpush2.msra.mxu0 0.0
    %668 = vmatprep.subr.mxu0 0.0
    %669 = vmatpush2.msra.mxu0 0.0
    %670 = vmatprep.subr.mxu0 0.0
    %671 = vmatpush2.msra.mxu0 0.0
    %672 = vmatprep.subr.mxu0 0.0
    %673 = vmatpush2.msra.mxu0 0.0
    %674 = vmatprep.mubr.f32.mxu0 0.0
    %675 = vmatmul.mubr.f32.gmra.mxu0 %v531
    %v676 = vpop.f32.mrf.mxu0
    %v677 = vadd.f32 0.0, %v676
    %v678 = vpop.f32.mrf.mxu0
    %v679 = vadd.f32 0.0, %v678
    %680 = vmatprep.mubr.f32.mxu0 0.0
    %681 = vmatmul.mubr.f32.gmra.mxu0 %v532
    %v682 = vpop.f32.mrf.mxu0
    %v683 = vadd.f32 0.0, %v682
    %v684 = vpop.f32.mrf.mxu0
    %v685 = vadd.f32 0.0, %v684
    %686 = vdwg.mxu0
    %687 = vmatprep.subr.mxu0 %v256
    %688 = vmatpush1.msra.mxu0 %v255
    %689 = vmatprep.subr.mxu0 %v248
    %690 = vmatpush1.msra.mxu0 %v247
    %691 = vmatprep.subr.mxu0 %v240
    %692 = vmatpush1.msra.mxu0 %v239
    %693 = vmatprep.subr.mxu0 %v232
    %694 = vmatpush1.msra.mxu0 %v231
    %695 = vmatprep.subr.mxu0 %v224
    %696 = vmatpush1.msra.mxu0 %v223
    %697 = vmatprep.subr.mxu0 %v216
    %698 = vmatpush1.msra.mxu0 %v215
    %699 = vmatprep.subr.mxu0 %v208
    %700 = vmatpush1.msra.mxu0 %v207
    %701 = vmatprep.subr.mxu0 %v200
    %702 = vmatpush1.msra.mxu0 %v199
    %703 = vmatprep.subr.mxu0 %v192
    %704 = vmatpush1.msra.mxu0 %v191
    %705 = vmatprep.subr.mxu0 %v184
    %706 = vmatpush1.msra.mxu0 %v183
    %707 = vmatprep.subr.mxu0 %v176
    %708 = vmatpush1.msra.mxu0 %v175
    %709 = vmatprep.subr.mxu0 %v168
    %710 = vmatpush1.msra.mxu0 %v167
    %711 = vmatprep.subr.mxu0 %v160
    %712 = vmatpush1.msra.mxu0 %v159
    %713 = vmatprep.subr.mxu0 %v152
    %714 = vmatpush1.msra.mxu0 %v151
    %715 = vmatprep.subr.mxu0 %v144
    %716 = vmatpush1.msra.mxu0 %v143
    %717 = vmatprep.subr.mxu0 %v136
    %718 = vmatpush1.msra.mxu0 %v135
    %719 = vmatprep.subr.mxu0 0.0
    %720 = vmatpush2.msra.mxu0 0.0
    %721 = vmatprep.subr.mxu0 0.0
    %722 = vmatpush2.msra.mxu0 0.0
    %723 = vmatprep.subr.mxu0 0.0
    %724 = vmatpush2.msra.mxu0 0.0
    %725 = vmatprep.subr.mxu0 0.0
    %726 = vmatpush2.msra.mxu0 0.0
    %727 = vmatprep.subr.mxu0 0.0
    %728 = vmatpush2.msra.mxu0 0.0
    %729 = vmatprep.subr.mxu0 0.0
    %730 = vmatpush2.msra.mxu0 0.0
    %731 = vmatprep.subr.mxu0 0.0
    %732 = vmatpush2.msra.mxu0 0.0
    %733 = vmatprep.subr.mxu0 0.0
    %734 = vmatpush2.msra.mxu0 0.0
    %735 = vmatprep.subr.mxu0 0.0
    %736 = vmatpush2.msra.mxu0 0.0
    %737 = vmatprep.subr.mxu0 0.0
    %738 = vmatpush2.msra.mxu0 0.0
    %739 = vmatprep.subr.mxu0 0.0
    %740 = vmatpush2.msra.mxu0 0.0
    %741 = vmatprep.subr.mxu0 0.0
    %742 = vmatpush2.msra.mxu0 0.0
    %743 = vmatprep.subr.mxu0 0.0
    %744 = vmatpush2.msra.mxu0 0.0
    %745 = vmatprep.subr.mxu0 0.0
    %746 = vmatpush2.msra.mxu0 0.0
    %747 = vmatprep.subr.mxu0 0.0
    %748 = vmatpush2.msra.mxu0 0.0
    %749 = vmatprep.subr.mxu0 0.0
    %750 = vmatpush2.msra.mxu0 0.0
    %751 = vmatprep.mubr.f32.mxu0 0.0
    %752 = vmatmul.mubr.f32.gmra.mxu0 %v531
    %v753 = vpop.f32.mrf.mxu0
    %v754 = vadd.f32 0.0, %v753
    %v755 = vpop.f32.mrf.mxu0
    %v756 = vadd.f32 0.0, %v755
    %757 = vmatprep.mubr.f32.mxu0 0.0
    %758 = vmatmul.mubr.f32.gmra.mxu0 %v532
    %v759 = vpop.f32.mrf.mxu0
    %v760 = vadd.f32 0.0, %v759
    %v761 = vpop.f32.mrf.mxu0
    %v762 = vadd.f32 0.0, %v761
    %763 = vdwg.mxu0
    %764 = vmatprep.subr.mxu0 %v258
    %765 = vmatpush1.msra.mxu0 %v257
    %766 = vmatprep.subr.mxu0 %v250
    %767 = vmatpush1.msra.mxu0 %v249
    %768 = vmatprep.subr.mxu0 %v242
    %769 = vmatpush1.msra.mxu0 %v241
    %770 = vmatprep.subr.mxu0 %v234
    %771 = vmatpush1.msra.mxu0 %v233
    %772 = vmatprep.subr.mxu0 %v226
    %773 = vmatpush1.msra.mxu0 %v225
    %774 = vmatprep.subr.mxu0 %v218
    %775 = vmatpush1.msra.mxu0 %v217
    %776 = vmatprep.subr.mxu0 %v210
    %777 = vmatpush1.msra.mxu0 %v209
    %778 = vmatprep.subr.mxu0 %v202
    %779 = vmatpush1.msra.mxu0 %v201
    %780 = vmatprep.subr.mxu0 %v194
    %781 = vmatpush1.msra.mxu0 %v193
    %782 = vmatprep.subr.mxu0 %v186
    %783 = vmatpush1.msra.mxu0 %v185
    %784 = vmatprep.subr.mxu0 %v178
    %785 = vmatpush1.msra.mxu0 %v177
    %786 = vmatprep.subr.mxu0 %v170
    %787 = vmatpush1.msra.mxu0 %v169
    %788 = vmatprep.subr.mxu0 %v162
    %789 = vmatpush1.msra.mxu0 %v161
    %790 = vmatprep.subr.mxu0 %v154
    %791 = vmatpush1.msra.mxu0 %v153
    %792 = vmatprep.subr.mxu0 %v146
    %793 = vmatpush1.msra.mxu0 %v145
    %794 = vmatprep.subr.mxu0 %v138
    %795 = vmatpush1.msra.mxu0 %v137
    %796 = vmatprep.subr.mxu0 0.0
    %797 = vmatpush2.msra.mxu0 0.0
    %798 = vmatprep.subr.mxu0 0.0
    %799 = vmatpush2.msra.mxu0 0.0
    %800 = vmatprep.subr.mxu0 0.0
    %801 = vmatpush2.msra.mxu0 0.0
    %802 = vmatprep.subr.mxu0 0.0
    %803 = vmatpush2.msra.mxu0 0.0
    %804 = vmatprep.subr.mxu0 0.0
    %805 = vmatpush2.msra.mxu0 0.0
    %806 = vmatprep.subr.mxu0 0.0
    %807 = vmatpush2.msra.mxu0 0.0
    %808 = vmatprep.subr.mxu0 0.0
    %809 = vmatpush2.msra.mxu0 0.0
    %810 = vmatprep.subr.mxu0 0.0
    %811 = vmatpush2.msra.mxu0 0.0
    %812 = vmatprep.subr.mxu0 0.0
    %813 = vmatpush2.msra.mxu0 0.0
    %814 = vmatprep.subr.mxu0 0.0
    %815 = vmatpush2.msra.mxu0 0.0
    %816 = vmatprep.subr.mxu0 0.0
    %817 = vmatpush2.msra.mxu0 0.0
    %818 = vmatprep.subr.mxu0 0.0
    %819 = vmatpush2.msra.mxu0 0.0
    %820 = vmatprep.subr.mxu0 0.0
    %821 = vmatpush2.msra.mxu0 0.0
    %822 = vmatprep.subr.mxu0 0.0
    %823 = vmatpush2.msra.mxu0 0.0
    %824 = vmatprep.subr.mxu0 0.0
    %825 = vmatpush2.msra.mxu0 0.0
    %826 = vmatprep.subr.mxu0 0.0
    %827 = vmatpush2.msra.mxu0 0.0
    %828 = vmatprep.mubr.f32.mxu0 0.0
    %829 = vmatmul.mubr.f32.gmra.mxu0 %v531
    %v830 = vpop.f32.mrf.mxu0
    %v831 = vadd.f32 0.0, %v830
    %v832 = vpop.f32.mrf.mxu0
    %v833 = vadd.f32 0.0, %v832
    %834 = vmatprep.mubr.f32.mxu0 0.0
    %835 = vmatmul.mubr.f32.gmra.mxu0 %v532
    %v836 = vpop.f32.mrf.mxu0
    %v837 = vadd.f32 0.0, %v836
    %v838 = vpop.f32.mrf.mxu0
    %v839 = vadd.f32 0.0, %v838
    %840 = vdwg.mxu0
    %v842 = vlaneseq
    %v843 = vshrl.u32 %v842, 7
    %v844 = vsub.s32 0, %v843
    %v845 = vrot.slane %v355, %v844
    %v846 = vlaneseq
    %v847 = vshrl.u32 %v846, 7
    %v848 = vsub.s32 1, %v847
    %v849 = vrot.slane %v355, %v848
    %v852 = vadd.f32 %v831, %v845
    %v853 = vadd.f32 %v833, %v849
    %v854 = vadd.f32 %v837, %v845
    %v855 = vadd.f32 %v839, %v849
    %v856 = vxor.u32 %v852, 2147483648
    %v857 = vxor.u32 %v853, 2147483648
    %v858 = vxor.u32 %v854, 2147483648
    %v859 = vxor.u32 %v855, 2147483648
    %v860 = vmul.f32 %v856, 1.442695
    %v861 = vpow.pop %v860
    %v862 = vmul.f32 %v857, 1.442695
    %v863 = vpow.pop %v862
    %v864 = vmul.f32 %v858, 1.442695
    %v865 = vpow.pop %v864
    %v866 = vmul.f32 %v859, 1.442695
    %v867 = vpow.pop %v866
    %v868 = vadd.f32 %v861, 1.0
    %v869 = vadd.f32 %v863, 1.0
    %v870 = vadd.f32 %v865, 1.0
    %v871 = vadd.f32 %v867, 1.0
    %v872 = vrcp.pop %v868
    %v873 = vmul.f32 1.0, %v872
    %v874 = vrcp.pop %v869
    %v875 = vmul.f32 1.0, %v874
    %v876 = vrcp.pop %v870
    %v877 = vmul.f32 1.0, %v876
    %v878 = vrcp.pop %v871
    %v879 = vmul.f32 1.0, %v878
    %s880 = scalar_lea.vmem [#allocation2], 16
    %v881 = vld [vmem:[%s880] sm:$0xff]
    %v882 = vld [vmem:[%s880 + $0x8] sm:$0xff]
    %883 = vmatprep.subr.mxu0 0.0
    %884 = vmatpush1.msra.mxu0 %v130
    %885 = vmatprep.subr.mxu0 0.0
    %886 = vmatpush1.msra.mxu0 %v129
    %887 = vmatprep.subr.mxu0 0.0
    %888 = vmatpush1.msra.mxu0 %v128
    %889 = vmatprep.subr.mxu0 0.0
    %890 = vmatpush1.msra.mxu0 %v127
    %891 = vmatprep.subr.mxu0 0.0
    %892 = vmatpush1.msra.mxu0 %v126
    %893 = vmatprep.subr.mxu0 0.0
    %894 = vmatpush1.msra.mxu0 %v125
    %895 = vmatprep.subr.mxu0 0.0
    %896 = vmatpush1.msra.mxu0 %v124
    %897 = vmatprep.subr.mxu0 0.0
    %898 = vmatpush1.msra.mxu0 %v123
    %899 = vmatprep.subr.mxu0 0.0
    %900 = vmatpush1.msra.mxu0 %v122
    %901 = vmatprep.subr.mxu0 0.0
    %902 = vmatpush1.msra.mxu0 %v121
    %903 = vmatprep.subr.mxu0 0.0
    %904 = vmatpush1.msra.mxu0 %v120
    %905 = vmatprep.subr.mxu0 0.0
    %906 = vmatpush1.msra.mxu0 %v119
    %907 = vmatprep.subr.mxu0 0.0
    %908 = vmatpush1.msra.mxu0 %v118
    %909 = vmatprep.subr.mxu0 0.0
    %910 = vmatpush1.msra.mxu0 %v117
    %911 = vmatprep.subr.mxu0 0.0
    %912 = vmatpush1.msra.mxu0 %v116
    %913 = vmatprep.subr.mxu0 0.0
    %914 = vmatpush1.msra.mxu0 %v115
    %915 = vmatprep.subr.mxu0 0.0
    %916 = vmatpush2.msra.mxu0 0.0
    %917 = vmatprep.subr.mxu0 0.0
    %918 = vmatpush2.msra.mxu0 0.0
    %919 = vmatprep.subr.mxu0 0.0
    %920 = vmatpush2.msra.mxu0 0.0
    %921 = vmatprep.subr.mxu0 0.0
    %922 = vmatpush2.msra.mxu0 0.0
    %923 = vmatprep.subr.mxu0 0.0
    %924 = vmatpush2.msra.mxu0 0.0
    %925 = vmatprep.subr.mxu0 0.0
    %926 = vmatpush2.msra.mxu0 0.0
    %927 = vmatprep.subr.mxu0 0.0
    %928 = vmatpush2.msra.mxu0 0.0
    %929 = vmatprep.subr.mxu0 0.0
    %930 = vmatpush2.msra.mxu0 0.0
    %931 = vmatprep.subr.mxu0 0.0
    %932 = vmatpush2.msra.mxu0 0.0
    %933 = vmatprep.subr.mxu0 0.0
    %934 = vmatpush2.msra.mxu0 0.0
    %935 = vmatprep.subr.mxu0 0.0
    %936 = vmatpush2.msra.mxu0 0.0
    %937 = vmatprep.subr.mxu0 0.0
    %938 = vmatpush2.msra.mxu0 0.0
    %939 = vmatprep.subr.mxu0 0.0
    %940 = vmatpush2.msra.mxu0 0.0
    %941 = vmatprep.subr.mxu0 0.0
    %942 = vmatpush2.msra.mxu0 0.0
    %943 = vmatprep.subr.mxu0 0.0
    %944 = vmatpush2.msra.mxu0 0.0
    %945 = vmatprep.subr.mxu0 0.0
    %946 = vmatpush2.msra.mxu0 0.0
    %947 = vmatprep.mubr.f32.mxu0 0.0
    %948 = vmatmul.mubr.f32.gmra.mxu0 %v881
    %v949 = vpop.f32.mrf.mxu0
    %v950 = vadd.f32 0.0, %v949
    %v951 = vpop.f32.mrf.mxu0
    %952 = vmatprep.mubr.f32.mxu0 0.0
    %953 = vmatmul.mubr.f32.gmra.mxu0 %v882
    %v954 = vpop.f32.mrf.mxu0
    %v955 = vadd.f32 0.0, %v954
    %v956 = vpop.f32.mrf.mxu0
    %957 = vdwg.mxu0
    %v958 = vsub.f32 %v881, %v950
    %v959 = vsub.f32 %v882, %v955
    %v960 = vmul.f32 %v958, %v958
    %v961 = vmul.f32 %v959, %v959
    %962 = vmatprep.subr.mxu0 0.0
    %963 = vmatpush1.msra.mxu0 %v130
    %964 = vmatprep.subr.mxu0 0.0
    %965 = vmatpush1.msra.mxu0 %v129
    %966 = vmatprep.subr.mxu0 0.0
    %967 = vmatpush1.msra.mxu0 %v128
    %968 = vmatprep.subr.mxu0 0.0
    %969 = vmatpush1.msra.mxu0 %v127
    %970 = vmatprep.subr.mxu0 0.0
    %971 = vmatpush1.msra.mxu0 %v126
    %972 = vmatprep.subr.mxu0 0.0
    %973 = vmatpush1.msra.mxu0 %v125
    %974 = vmatprep.subr.mxu0 0.0
    %975 = vmatpush1.msra.mxu0 %v124
    %976 = vmatprep.subr.mxu0 0.0
    %977 = vmatpush1.msra.mxu0 %v123
    %978 = vmatprep.subr.mxu0 0.0
    %979 = vmatpush1.msra.mxu0 %v122
    %980 = vmatprep.subr.mxu0 0.0
    %981 = vmatpush1.msra.mxu0 %v121
    %982 = vmatprep.subr.mxu0 0.0
    %983 = vmatpush1.msra.mxu0 %v120
    %984 = vmatprep.subr.mxu0 0.0
    %985 = vmatpush1.msra.mxu0 %v119
    %986 = vmatprep.subr.mxu0 0.0
    %987 = vmatpush1.msra.mxu0 %v118
    %988 = vmatprep.subr.mxu0 0.0
    %989 = vmatpush1.msra.mxu0 %v117
    %990 = vmatprep.subr.mxu0 0.0
    %991 = vmatpush1.msra.mxu0 %v116
    %992 = vmatprep.subr.mxu0 0.0
    %993 = vmatpush1.msra.mxu0 %v115
    %994 = vmatprep.subr.mxu0 0.0
    %995 = vmatpush2.msra.mxu0 0.0
    %996 = vmatprep.subr.mxu0 0.0
    %997 = vmatpush2.msra.mxu0 0.0
    %998 = vmatprep.subr.mxu0 0.0
    %999 = vmatpush2.msra.mxu0 0.0
    %1000 = vmatprep.subr.mxu0 0.0
    %1001 = vmatpush2.msra.mxu0 0.0
    %1002 = vmatprep.subr.mxu0 0.0
    %1003 = vmatpush2.msra.mxu0 0.0
    %1004 = vmatprep.subr.mxu0 0.0
    %1005 = vmatpush2.msra.mxu0 0.0
    %1006 = vmatprep.subr.mxu0 0.0
    %1007 = vmatpush2.msra.mxu0 0.0
    %1008 = vmatprep.subr.mxu0 0.0
    %1009 = vmatpush2.msra.mxu0 0.0
    %1010 = vmatprep.subr.mxu0 0.0
    %1011 = vmatpush2.msra.mxu0 0.0
    %1012 = vmatprep.subr.mxu0 0.0
    %1013 = vmatpush2.msra.mxu0 0.0
    %1014 = vmatprep.subr.mxu0 0.0
    %1015 = vmatpush2.msra.mxu0 0.0
    %1016 = vmatprep.subr.mxu0 0.0
    %1017 = vmatpush2.msra.mxu0 0.0
    %1018 = vmatprep.subr.mxu0 0.0
    %1019 = vmatpush2.msra.mxu0 0.0
    %1020 = vmatprep.subr.mxu0 0.0
    %1021 = vmatpush2.msra.mxu0 0.0
    %1022 = vmatprep.subr.mxu0 0.0
    %1023 = vmatpush2.msra.mxu0 0.0
    %1024 = vmatprep.subr.mxu0 0.0
    %1025 = vmatpush2.msra.mxu0 0.0
    %1026 = vmatprep.mubr.f32.mxu0 0.0
    %1027 = vmatmul.mubr.f32.gmra.mxu0 %v960
    %v1028 = vpop.f32.mrf.mxu0
    %v1029 = vadd.f32 1e-05, %v1028
    %v1030 = vpop.f32.mrf.mxu0
    %1031 = vmatprep.mubr.f32.mxu0 0.0
    %1032 = vmatmul.mubr.f32.gmra.mxu0 %v961
    %v1033 = vpop.f32.mrf.mxu0
    %v1034 = vadd.f32 1e-05, %v1033
    %v1035 = vpop.f32.mrf.mxu0
    %1036 = vdwg.mxu0
    %v1037 = vrsqrt.pop %v1029
    %v1038 = vrsqrt.pop %v1034
    %v1039 = vmul.f32 %v958, %v1037
    %v1040 = vmul.f32 %v959, %v1038
    %v1041 = vmul.f32 %v1039, %v521
    %v1042 = vmul.f32 %v1040, %v521
    %v1043 = vadd.f32 %v1041, %v529
    %v1044 = vadd.f32 %v1042, %v529
    %1045 = vmatprep.subr.mxu0 %v252
    %1046 = vmatpush1.msra.mxu0 %v251
    %1047 = vmatprep.subr.mxu0 %v244
    %1048 = vmatpush1.msra.mxu0 %v243
    %1049 = vmatprep.subr.mxu0 %v236
    %1050 = vmatpush1.msra.mxu0 %v235
    %1051 = vmatprep.subr.mxu0 %v228
    %1052 = vmatpush1.msra.mxu0 %v227
    %1053 = vmatprep.subr.mxu0 %v220
    %1054 = vmatpush1.msra.mxu0 %v219
    %1055 = vmatprep.subr.mxu0 %v212
    %1056 = vmatpush1.msra.mxu0 %v211
    %1057 = vmatprep.subr.mxu0 %v204
    %1058 = vmatpush1.msra.mxu0 %v203
    %1059 = vmatprep.subr.mxu0 %v196
    %1060 = vmatpush1.msra.mxu0 %v195
    %1061 = vmatprep.subr.mxu0 %v188
    %1062 = vmatpush1.msra.mxu0 %v187
    %1063 = vmatprep.subr.mxu0 %v180
    %1064 = vmatpush1.msra.mxu0 %v179
    %1065 = vmatprep.subr.mxu0 %v172
    %1066 = vmatpush1.msra.mxu0 %v171
    %1067 = vmatprep.subr.mxu0 %v164
    %1068 = vmatpush1.msra.mxu0 %v163
    %1069 = vmatprep.subr.mxu0 %v156
    %1070 = vmatpush1.msra.mxu0 %v155
    %1071 = vmatprep.subr.mxu0 %v148
    %1072 = vmatpush1.msra.mxu0 %v147
    %1073 = vmatprep.subr.mxu0 %v140
    %1074 = vmatpush1.msra.mxu0 %v139
    %1075 = vmatprep.subr.mxu0 %v132
    %1076 = vmatpush1.msra.mxu0 %v131
    %1077 = vmatprep.subr.mxu0 0.0
    %1078 = vmatpush2.msra.mxu0 0.0
    %1079 = vmatprep.subr.mxu0 0.0
    %1080 = vmatpush2.msra.mxu0 0.0
    %1081 = vmatprep.subr.mxu0 0.0
    %1082 = vmatpush2.msra.mxu0 0.0
    %1083 = vmatprep.subr.mxu0 0.0
    %1084 = vmatpush2.msra.mxu0 0.0
    %1085 = vmatprep.subr.mxu0 0.0
    %1086 = vmatpush2.msra.mxu0 0.0
    %1087 = vmatprep.subr.mxu0 0.0
    %1088 = vmatpush2.msra.mxu0 0.0
    %1089 = vmatprep.subr.mxu0 0.0
    %1090 = vmatpush2.msra.mxu0 0.0
    %1091 = vmatprep.subr.mxu0 0.0
    %1092 = vmatpush2.msra.mxu0 0.0
    %1093 = vmatprep.subr.mxu0 0.0
    %1094 = vmatpush2.msra.mxu0 0.0
    %1095 = vmatprep.subr.mxu0 0.0
    %1096 = vmatpush2.msra.mxu0 0.0
    %1097 = vmatprep.subr.mxu0 0.0
    %1098 = vmatpush2.msra.mxu0 0.0
    %1099 = vmatprep.subr.mxu0 0.0
    %1100 = vmatpush2.msra.mxu0 0.0
    %1101 = vmatprep.subr.mxu0 0.0
    %1102 = vmatpush2.msra.mxu0 0.0
    %1103 = vmatprep.subr.mxu0 0.0
    %1104 = vmatpush2.msra.mxu0 0.0
    %1105 = vmatprep.subr.mxu0 0.0
    %1106 = vmatpush2.msra.mxu0 0.0
    %1107 = vmatprep.subr.mxu0 0.0
    %1108 = vmatpush2.msra.mxu0 0.0
    %1109 = vmatprep.mubr.f32.mxu0 0.0
    %1110 = vmatmul.mubr.f32.gmra.mxu0 %v1043
    %v1111 = vpop.f32.mrf.mxu0
    %v1112 = vadd.f32 0.0, %v1111
    %v1113 = vpop.f32.mrf.mxu0
    %v1114 = vadd.f32 0.0, %v1113
    %1115 = vmatprep.mubr.f32.mxu0 0.0
    %1116 = vmatmul.mubr.f32.gmra.mxu0 %v1044
    %v1117 = vpop.f32.mrf.mxu0
    %v1118 = vadd.f32 0.0, %v1117
    %v1119 = vpop.f32.mrf.mxu0
    %v1120 = vadd.f32 0.0, %v1119
    %1121 = vdwg.mxu0
    %1122 = vmatprep.subr.mxu0 %v254
    %1123 = vmatpush1.msra.mxu0 %v253
    %1124 = vmatprep.subr.mxu0 %v246
    %1125 = vmatpush1.msra.mxu0 %v245
    %1126 = vmatprep.subr.mxu0 %v238
    %1127 = vmatpush1.msra.mxu0 %v237
    %1128 = vmatprep.subr.mxu0 %v230
    %1129 = vmatpush1.msra.mxu0 %v229
    %1130 = vmatprep.subr.mxu0 %v222
    %1131 = vmatpush1.msra.mxu0 %v221
    %1132 = vmatprep.subr.mxu0 %v214
    %1133 = vmatpush1.msra.mxu0 %v213
    %1134 = vmatprep.subr.mxu0 %v206
    %1135 = vmatpush1.msra.mxu0 %v205
    %1136 = vmatprep.subr.mxu0 %v198
    %1137 = vmatpush1.msra.mxu0 %v197
    %1138 = vmatprep.subr.mxu0 %v190
    %1139 = vmatpush1.msra.mxu0 %v189
    %1140 = vmatprep.subr.mxu0 %v182
    %1141 = vmatpush1.msra.mxu0 %v181
    %1142 = vmatprep.subr.mxu0 %v174
    %1143 = vmatpush1.msra.mxu0 %v173
    %1144 = vmatprep.subr.mxu0 %v166
    %1145 = vmatpush1.msra.mxu0 %v165
    %1146 = vmatprep.subr.mxu0 %v158
    %1147 = vmatpush1.msra.mxu0 %v157
    %1148 = vmatprep.subr.mxu0 %v150
    %1149 = vmatpush1.msra.mxu0 %v149
    %1150 = vmatprep.subr.mxu0 %v142
    %1151 = vmatpush1.msra.mxu0 %v141
    %1152 = vmatprep.subr.mxu0 %v134
    %1153 = vmatpush1.msra.mxu0 %v133
    %1154 = vmatprep.subr.mxu0 0.0
    %1155 = vmatpush2.msra.mxu0 0.0
    %1156 = vmatprep.subr.mxu0 0.0
    %1157 = vmatpush2.msra.mxu0 0.0
    %1158 = vmatprep.subr.mxu0 0.0
    %1159 = vmatpush2.msra.mxu0 0.0
    %1160 = vmatprep.subr.mxu0 0.0
    %1161 = vmatpush2.msra.mxu0 0.0
    %1162 = vmatprep.subr.mxu0 0.0
    %1163 = vmatpush2.msra.mxu0 0.0
    %1164 = vmatprep.subr.mxu0 0.0
    %1165 = vmatpush2.msra.mxu0 0.0
    %1166 = vmatprep.subr.mxu0 0.0
    %1167 = vmatpush2.msra.mxu0 0.0
    %1168 = vmatprep.subr.mxu0 0.0
    %1169 = vmatpush2.msra.mxu0 0.0
    %1170 = vmatprep.subr.mxu0 0.0
    %1171 = vmatpush2.msra.mxu0 0.0
    %1172 = vmatprep.subr.mxu0 0.0
    %1173 = vmatpush2.msra.mxu0 0.0
    %1174 = vmatprep.subr.mxu0 0.0
    %1175 = vmatpush2.msra.mxu0 0.0
    %1176 = vmatprep.subr.mxu0 0.0
    %1177 = vmatpush2.msra.mxu0 0.0
    %1178 = vmatprep.subr.mxu0 0.0
    %1179 = vmatpush2.msra.mxu0 0.0
    %1180 = vmatprep.subr.mxu0 0.0
    %1181 = vmatpush2.msra.mxu0 0.0
    %1182 = vmatprep.subr.mxu0 0.0
    %1183 = vmatpush2.msra.mxu0 0.0
    %1184 = vmatprep.subr.mxu0 0.0
    %1185 = vmatpush2.msra.mxu0 0.0
    %1186 = vmatprep.mubr.f32.mxu0 0.0
    %1187 = vmatmul.mubr.f32.gmra.mxu0 %v1043
    %v1188 = vpop.f32.mrf.mxu0
    %v1189 = vadd.f32 0.0, %v1188
    %v1190 = vpop.f32.mrf.mxu0
    %v1191 = vadd.f32 0.0, %v1190
    %1192 = vmatprep.mubr.f32.mxu0 0.0
    %1193 = vmatmul.mubr.f32.gmra.mxu0 %v1044
    %v1194 = vpop.f32.mrf.mxu0
    %v1195 = vadd.f32 0.0, %v1194
    %v1196 = vpop.f32.mrf.mxu0
    %v1197 = vadd.f32 0.0, %v1196
    %1198 = vdwg.mxu0
    %1199 = vmatprep.subr.mxu0 %v256
    %1200 = vmatpush1.msra.mxu0 %v255
    %1201 = vmatprep.subr.mxu0 %v248
    %1202 = vmatpush1.msra.mxu0 %v247
    %1203 = vmatprep.subr.mxu0 %v240
    %1204 = vmatpush1.msra.mxu0 %v239
    %1205 = vmatprep.subr.mxu0 %v232
    %1206 = vmatpush1.msra.mxu0 %v231
    %1207 = vmatprep.subr.mxu0 %v224
    %1208 = vmatpush1.msra.mxu0 %v223
    %1209 = vmatprep.subr.mxu0 %v216
    %1210 = vmatpush1.msra.mxu0 %v215
    %1211 = vmatprep.subr.mxu0 %v208
    %1212 = vmatpush1.msra.mxu0 %v207
    %1213 = vmatprep.subr.mxu0 %v200
    %1214 = vmatpush1.msra.mxu0 %v199
    %1215 = vmatprep.subr.mxu0 %v192
    %1216 = vmatpush1.msra.mxu0 %v191
    %1217 = vmatprep.subr.mxu0 %v184
    %1218 = vmatpush1.msra.mxu0 %v183
    %1219 = vmatprep.subr.mxu0 %v176
    %1220 = vmatpush1.msra.mxu0 %v175
    %1221 = vmatprep.subr.mxu0 %v168
    %1222 = vmatpush1.msra.mxu0 %v167
    %1223 = vmatprep.subr.mxu0 %v160
    %1224 = vmatpush1.msra.mxu0 %v159
    %1225 = vmatprep.subr.mxu0 %v152
    %1226 = vmatpush1.msra.mxu0 %v151
    %1227 = vmatprep.subr.mxu0 %v144
    %1228 = vmatpush1.msra.mxu0 %v143
    %1229 = vmatprep.subr.mxu0 %v136
    %1230 = vmatpush1.msra.mxu0 %v135
    %1231 = vmatprep.subr.mxu0 0.0
    %1232 = vmatpush2.msra.mxu0 0.0
    %1233 = vmatprep.subr.mxu0 0.0
    %1234 = vmatpush2.msra.mxu0 0.0
    %1235 = vmatprep.subr.mxu0 0.0
    %1236 = vmatpush2.msra.mxu0 0.0
    %1237 = vmatprep.subr.mxu0 0.0
    %1238 = vmatpush2.msra.mxu0 0.0
    %1239 = vmatprep.subr.mxu0 0.0
    %1240 = vmatpush2.msra.mxu0 0.0
    %1241 = vmatprep.subr.mxu0 0.0
    %1242 = vmatpush2.msra.mxu0 0.0
    %1243 = vmatprep.subr.mxu0 0.0
    %1244 = vmatpush2.msra.mxu0 0.0
    %1245 = vmatprep.subr.mxu0 0.0
    %1246 = vmatpush2.msra.mxu0 0.0
    %1247 = vmatprep.subr.mxu0 0.0
    %1248 = vmatpush2.msra.mxu0 0.0
    %1249 = vmatprep.subr.mxu0 0.0
    %1250 = vmatpush2.msra.mxu0 0.0
    %1251 = vmatprep.subr.mxu0 0.0
    %1252 = vmatpush2.msra.mxu0 0.0
    %1253 = vmatprep.subr.mxu0 0.0
    %1254 = vmatpush2.msra.mxu0 0.0
    %1255 = vmatprep.subr.mxu0 0.0
    %1256 = vmatpush2.msra.mxu0 0.0
    %1257 = vmatprep.subr.mxu0 0.0
    %1258 = vmatpush2.msra.mxu0 0.0
    %1259 = vmatprep.subr.mxu0 0.0
    %1260 = vmatpush2.msra.mxu0 0.0
    %1261 = vmatprep.subr.mxu0 0.0
    %1262 = vmatpush2.msra.mxu0 0.0
    %1263 = vmatprep.mubr.f32.mxu0 0.0
    %1264 = vmatmul.mubr.f32.gmra.mxu0 %v1043
    %v1265 = vpop.f32.mrf.mxu0
    %v1266 = vadd.f32 0.0, %v1265
    %v1267 = vpop.f32.mrf.mxu0
    %v1268 = vadd.f32 0.0, %v1267
    %1269 = vmatprep.mubr.f32.mxu0 0.0
    %1270 = vmatmul.mubr.f32.gmra.mxu0 %v1044
    %v1271 = vpop.f32.mrf.mxu0
    %v1272 = vadd.f32 0.0, %v1271
    %v1273 = vpop.f32.mrf.mxu0
    %v1274 = vadd.f32 0.0, %v1273
    %1275 = vdwg.mxu0
    %1276 = vmatprep.subr.mxu0 %v258
    %1277 = vmatpush1.msra.mxu0 %v257
    %1278 = vmatprep.subr.mxu0 %v250
    %1279 = vmatpush1.msra.mxu0 %v249
    %1280 = vmatprep.subr.mxu0 %v242
    %1281 = vmatpush1.msra.mxu0 %v241
    %1282 = vmatprep.subr.mxu0 %v234
    %1283 = vmatpush1.msra.mxu0 %v233
    %1284 = vmatprep.subr.mxu0 %v226
    %1285 = vmatpush1.msra.mxu0 %v225
    %1286 = vmatprep.subr.mxu0 %v218
    %1287 = vmatpush1.msra.mxu0 %v217
    %1288 = vmatprep.subr.mxu0 %v210
    %1289 = vmatpush1.msra.mxu0 %v209
    %1290 = vmatprep.subr.mxu0 %v202
    %1291 = vmatpush1.msra.mxu0 %v201
    %1292 = vmatprep.subr.mxu0 %v194
    %1293 = vmatpush1.msra.mxu0 %v193
    %1294 = vmatprep.subr.mxu0 %v186
    %1295 = vmatpush1.msra.mxu0 %v185
    %1296 = vmatprep.subr.mxu0 %v178
    %1297 = vmatpush1.msra.mxu0 %v177
    %1298 = vmatprep.subr.mxu0 %v170
    %1299 = vmatpush1.msra.mxu0 %v169
    %1300 = vmatprep.subr.mxu0 %v162
    %1301 = vmatpush1.msra.mxu0 %v161
    %1302 = vmatprep.subr.mxu0 %v154
    %1303 = vmatpush1.msra.mxu0 %v153
    %1304 = vmatprep.subr.mxu0 %v146
    %1305 = vmatpush1.msra.mxu0 %v145
    %1306 = vmatprep.subr.mxu0 %v138
    %1307 = vmatpush1.msra.mxu0 %v137
    %1308 = vmatprep.subr.mxu0 0.0
    %1309 = vmatpush2.msra.mxu0 0.0
    %1310 = vmatprep.subr.mxu0 0.0
    %1311 = vmatpush2.msra.mxu0 0.0
    %1312 = vmatprep.subr.mxu0 0.0
    %1313 = vmatpush2.msra.mxu0 0.0
    %1314 = vmatprep.subr.mxu0 0.0
    %1315 = vmatpush2.msra.mxu0 0.0
    %1316 = vmatprep.subr.mxu0 0.0
    %1317 = vmatpush2.msra.mxu0 0.0
    %1318 = vmatprep.subr.mxu0 0.0
    %1319 = vmatpush2.msra.mxu0 0.0
    %1320 = vmatprep.subr.mxu0 0.0
    %1321 = vmatpush2.msra.mxu0 0.0
    %1322 = vmatprep.subr.mxu0 0.0
    %1323 = vmatpush2.msra.mxu0 0.0
    %1324 = vmatprep.subr.mxu0 0.0
    %1325 = vmatpush2.msra.mxu0 0.0
    %1326 = vmatprep.subr.mxu0 0.0
    %1327 = vmatpush2.msra.mxu0 0.0
    %1328 = vmatprep.subr.mxu0 0.0
    %1329 = vmatpush2.msra.mxu0 0.0
    %1330 = vmatprep.subr.mxu0 0.0
    %1331 = vmatpush2.msra.mxu0 0.0
    %1332 = vmatprep.subr.mxu0 0.0
    %1333 = vmatpush2.msra.mxu0 0.0
    %1334 = vmatprep.subr.mxu0 0.0
    %1335 = vmatpush2.msra.mxu0 0.0
    %1336 = vmatprep.subr.mxu0 0.0
    %1337 = vmatpush2.msra.mxu0 0.0
    %1338 = vmatprep.subr.mxu0 0.0
    %1339 = vmatpush2.msra.mxu0 0.0
    %1340 = vmatprep.mubr.f32.mxu0 0.0
    %1341 = vmatmul.mubr.f32.gmra.mxu0 %v1043
    %v1342 = vpop.f32.mrf.mxu0
    %v1343 = vadd.f32 0.0, %v1342
    %v1344 = vpop.f32.mrf.mxu0
    %v1345 = vadd.f32 0.0, %v1344
    %1346 = vmatprep.mubr.f32.mxu0 0.0
    %1347 = vmatmul.mubr.f32.gmra.mxu0 %v1044
    %v1348 = vpop.f32.mrf.mxu0
    %v1349 = vadd.f32 0.0, %v1348
    %v1350 = vpop.f32.mrf.mxu0
    %v1351 = vadd.f32 0.0, %v1350
    %1352 = vdwg.mxu0
    %v1353 = vadd.f32 %v1343, %v845
    %v1354 = vadd.f32 %v1345, %v849
    %v1355 = vadd.f32 %v1349, %v845
    %v1356 = vadd.f32 %v1351, %v849
    %v1357 = vxor.u32 %v1353, 2147483648
    %v1358 = vxor.u32 %v1354, 2147483648
    %v1359 = vxor.u32 %v1355, 2147483648
    %v1360 = vxor.u32 %v1356, 2147483648
    %v1361 = vmul.f32 %v1357, 1.442695
    %v1362 = vpow.pop %v1361
    %v1363 = vmul.f32 %v1358, 1.442695
    %v1364 = vpow.pop %v1363
    %v1365 = vmul.f32 %v1359, 1.442695
    %v1366 = vpow.pop %v1365
    %v1367 = vmul.f32 %v1360, 1.442695
    %v1368 = vpow.pop %v1367
    %v1369 = vadd.f32 %v1362, 1.0
    %v1370 = vadd.f32 %v1364, 1.0
    %v1371 = vadd.f32 %v1366, 1.0
    %v1372 = vadd.f32 %v1368, 1.0
    %v1373 = vrcp.pop %v1369
    %v1374 = vmul.f32 1.0, %v1373
    %v1375 = vrcp.pop %v1370
    %v1376 = vmul.f32 1.0, %v1375
    %v1377 = vrcp.pop %v1371
    %v1378 = vmul.f32 1.0, %v1377
    %v1379 = vrcp.pop %v1372
    %v1380 = vmul.f32 1.0, %v1379
    %v1381 = vmul.f32 %v600, %v677
    %v1382 = vmul.f32 %v602, %v679
    %v1383 = vmul.f32 %v606, %v683
    %v1384 = vmul.f32 %v608, %v685
    %1385 = vmatprep.subr.mxu0 %v290
    %1386 = vmatpush1.msra.mxu0 %v289
    %1387 = vmatprep.subr.mxu0 %v288
    %1388 = vmatpush1.msra.mxu0 %v287
    %1389 = vmatprep.subr.mxu0 %v286
    %1390 = vmatpush1.msra.mxu0 %v285
    %1391 = vmatprep.subr.mxu0 %v284
    %1392 = vmatpush1.msra.mxu0 %v283
    %1393 = vmatprep.subr.mxu0 %v282
    %1394 = vmatpush1.msra.mxu0 %v281
    %1395 = vmatprep.subr.mxu0 %v280
    %1396 = vmatpush1.msra.mxu0 %v279
    %1397 = vmatprep.subr.mxu0 %v278
    %1398 = vmatpush1.msra.mxu0 %v277
    %1399 = vmatprep.subr.mxu0 %v276
    %1400 = vmatpush1.msra.mxu0 %v275
    %1401 = vmatprep.subr.mxu0 %v274
    %1402 = vmatpush1.msra.mxu0 %v273
    %1403 = vmatprep.subr.mxu0 %v272
    %1404 = vmatpush1.msra.mxu0 %v271
    %1405 = vmatprep.subr.mxu0 %v270
    %1406 = vmatpush1.msra.mxu0 %v269
    %1407 = vmatprep.subr.mxu0 %v268
    %1408 = vmatpush1.msra.mxu0 %v267
    %1409 = vmatprep.subr.mxu0 %v266
    %1410 = vmatpush1.msra.mxu0 %v265
    %1411 = vmatprep.subr.mxu0 %v264
    %1412 = vmatpush1.msra.mxu0 %v263
    %1413 = vmatprep.subr.mxu0 %v262
    %1414 = vmatpush1.msra.mxu0 %v261
    %1415 = vmatprep.subr.mxu0 %v260
    %1416 = vmatpush1.msra.mxu0 %v259
    %1417 = vmatprep.subr.mxu0 %v322
    %1418 = vmatpush2.msra.mxu0 %v321
    %1419 = vmatprep.subr.mxu0 %v320
    %1420 = vmatpush2.msra.mxu0 %v319
    %1421 = vmatprep.subr.mxu0 %v318
    %1422 = vmatpush2.msra.mxu0 %v317
    %1423 = vmatprep.subr.mxu0 %v316
    %1424 = vmatpush2.msra.mxu0 %v315
    %1425 = vmatprep.subr.mxu0 %v314
    %1426 = vmatpush2.msra.mxu0 %v313
    %1427 = vmatprep.subr.mxu0 %v312
    %1428 = vmatpush2.msra.mxu0 %v311
    %1429 = vmatprep.subr.mxu0 %v310
    %1430 = vmatpush2.msra.mxu0 %v309
    %1431 = vmatprep.subr.mxu0 %v308
    %1432 = vmatpush2.msra.mxu0 %v307
    %1433 = vmatprep.subr.mxu0 %v306
    %1434 = vmatpush2.msra.mxu0 %v305
    %1435 = vmatprep.subr.mxu0 %v304
    %1436 = vmatpush2.msra.mxu0 %v303
    %1437 = vmatprep.subr.mxu0 %v302
    %1438 = vmatpush2.msra.mxu0 %v301
    %1439 = vmatprep.subr.mxu0 %v300
    %1440 = vmatpush2.msra.mxu0 %v299
    %1441 = vmatprep.subr.mxu0 %v298
    %1442 = vmatpush2.msra.mxu0 %v297
    %1443 = vmatprep.subr.mxu0 %v296
    %1444 = vmatpush2.msra.mxu0 %v295
    %1445 = vmatprep.subr.mxu0 %v294
    %1446 = vmatpush2.msra.mxu0 %v293
    %1447 = vmatprep.subr.mxu0 %v292
    %1448 = vmatpush2.msra.mxu0 %v291
    %1449 = vmatprep.mubr.f32.mxu0 %v1382
    %1450 = vmatmul.mubr.f32.gmra.mxu0 %v1381
    %v1451 = vpop.f32.mrf.mxu0
    %v1452 = vadd.f32 0.0, %v1451
    %v1453 = vpop.f32.mrf.mxu0
    %v1454 = vadd.f32 0.0, %v1453
    %1455 = vmatprep.mubr.f32.mxu0 %v1384
    %1456 = vmatmul.mubr.f32.gmra.mxu0 %v1383
    %v1457 = vpop.f32.mrf.mxu0
    %v1458 = vadd.f32 0.0, %v1457
    %v1459 = vpop.f32.mrf.mxu0
    %v1460 = vadd.f32 0.0, %v1459
    %1461 = vdwg.mxu0
    %v1462 = vmul.f32 %v1452, 0.35355338
    %v1463 = vmul.f32 %v1454, 0.35355338
    %v1464 = vmul.f32 %v1458, 0.35355338
    %v1465 = vmul.f32 %v1460, 0.35355338
    %v1466 = vmul.f32 %v600, %v1189
    %v1467 = vmul.f32 %v602, %v1191
    %v1468 = vmul.f32 %v606, %v1195
    %v1469 = vmul.f32 %v608, %v1197
    %1470 = vmatprep.subr.mxu0 %v290
    %1471 = vmatpush1.msra.mxu0 %v289
    %1472 = vmatprep.subr.mxu0 %v288
    %1473 = vmatpush1.msra.mxu0 %v287
    %1474 = vmatprep.subr.mxu0 %v286
    %1475 = vmatpush1.msra.mxu0 %v285
    %1476 = vmatprep.subr.mxu0 %v284
    %1477 = vmatpush1.msra.mxu0 %v283
    %1478 = vmatprep.subr.mxu0 %v282
    %1479 = vmatpush1.msra.mxu0 %v281
    %1480 = vmatprep.subr.mxu0 %v280
    %1481 = vmatpush1.msra.mxu0 %v279
    %1482 = vmatprep.subr.mxu0 %v278
    %1483 = vmatpush1.msra.mxu0 %v277
    %1484 = vmatprep.subr.mxu0 %v276
    %1485 = vmatpush1.msra.mxu0 %v275
    %1486 = vmatprep.subr.mxu0 %v274
    %1487 = vmatpush1.msra.mxu0 %v273
    %1488 = vmatprep.subr.mxu0 %v272
    %1489 = vmatpush1.msra.mxu0 %v271
    %1490 = vmatprep.subr.mxu0 %v270
    %1491 = vmatpush1.msra.mxu0 %v269
    %1492 = vmatprep.subr.mxu0 %v268
    %1493 = vmatpush1.msra.mxu0 %v267
    %1494 = vmatprep.subr.mxu0 %v266
    %1495 = vmatpush1.msra.mxu0 %v265
    %1496 = vmatprep.subr.mxu0 %v264
    %1497 = vmatpush1.msra.mxu0 %v263
    %1498 = vmatprep.subr.mxu0 %v262
    %1499 = vmatpush1.msra.mxu0 %v261
    %1500 = vmatprep.subr.mxu0 %v260
    %1501 = vmatpush1.msra.mxu0 %v259
    %1502 = vmatprep.subr.mxu0 %v322
    %1503 = vmatpush2.msra.mxu0 %v321
    %1504 = vmatprep.subr.mxu0 %v320
    %1505 = vmatpush2.msra.mxu0 %v319
    %1506 = vmatprep.subr.mxu0 %v318
    %1507 = vmatpush2.msra.mxu0 %v317
    %1508 = vmatprep.subr.mxu0 %v316
    %1509 = vmatpush2.msra.mxu0 %v315
    %1510 = vmatprep.subr.mxu0 %v314
    %1511 = vmatpush2.msra.mxu0 %v313
    %1512 = vmatprep.subr.mxu0 %v312
    %1513 = vmatpush2.msra.mxu0 %v311
    %1514 = vmatprep.subr.mxu0 %v310
    %1515 = vmatpush2.msra.mxu0 %v309
    %1516 = vmatprep.subr.mxu0 %v308
    %1517 = vmatpush2.msra.mxu0 %v307
    %1518 = vmatprep.subr.mxu0 %v306
    %1519 = vmatpush2.msra.mxu0 %v305
    %1520 = vmatprep.subr.mxu0 %v304
    %1521 = vmatpush2.msra.mxu0 %v303
    %1522 = vmatprep.subr.mxu0 %v302
    %1523 = vmatpush2.msra.mxu0 %v301
    %1524 = vmatprep.subr.mxu0 %v300
    %1525 = vmatpush2.msra.mxu0 %v299
    %1526 = vmatprep.subr.mxu0 %v298
    %1527 = vmatpush2.msra.mxu0 %v297
    %1528 = vmatprep.subr.mxu0 %v296
    %1529 = vmatpush2.msra.mxu0 %v295
    %1530 = vmatprep.subr.mxu0 %v294
    %1531 = vmatpush2.msra.mxu0 %v293
    %1532 = vmatprep.subr.mxu0 %v292
    %1533 = vmatpush2.msra.mxu0 %v291
    %1534 = vmatprep.mubr.f32.mxu0 %v1467
    %1535 = vmatmul.mubr.f32.gmra.mxu0 %v1466
    %v1536 = vpop.f32.mrf.mxu0
    %v1537 = vadd.f32 0.0, %v1536
    %v1538 = vpop.f32.mrf.mxu0
    %v1539 = vadd.f32 0.0, %v1538
    %1540 = vmatprep.mubr.f32.mxu0 %v1469
    %1541 = vmatmul.mubr.f32.gmra.mxu0 %v1468
    %v1542 = vpop.f32.mrf.mxu0
    %v1543 = vadd.f32 0.0, %v1542
    %v1544 = vpop.f32.mrf.mxu0
    %v1545 = vadd.f32 0.0, %v1544
    %1546 = vdwg.mxu0
    %v1547 = vmul.f32 %v1537, 0.35355338
    %v1548 = vmul.f32 %v1539, 0.35355338
    %v1549 = vmul.f32 %v1543, 0.35355338
    %v1550 = vmul.f32 %v1545, 0.35355338
    %v1551 = vmax.f32 %v1462, %v1547
    %v1552 = vmax.f32 %v1463, %v1548
    %v1553 = vmax.f32 %v1464, %v1549
    %v1554 = vmax.f32 %v1465, %v1550
    %v1555 = vsub.f32 %v1462, %v1551
    %v1556 = vsub.f32 %v1463, %v1552
    %v1557 = vsub.f32 %v1464, %v1553
    %v1558 = vsub.f32 %v1465, %v1554
    %v1559 = vmul.f32 %v1555, 1.442695
    %v1560 = vpow.pop %v1559
    %v1561 = vmul.f32 %v1556, 1.442695
    %v1562 = vpow.pop %v1561
    %v1563 = vmul.f32 %v1557, 1.442695
    %v1564 = vpow.pop %v1563
    %v1565 = vmul.f32 %v1558, 1.442695
    %v1566 = vpow.pop %v1565
    %v1567 = vadd.f32 %v1560, 0.0
    %v1568 = vadd.f32 %v1562, 0.0
    %v1569 = vadd.f32 %v1564, 0.0
    %v1570 = vadd.f32 %v1566, 0.0
    %v1571 = vmul.f32 %v1560, %v754
    %v1572 = vmul.f32 %v1562, %v756
    %v1573 = vmul.f32 %v1564, %v760
    %v1574 = vmul.f32 %v1566, %v762
    %v1575 = vadd.f32 %v1571, 0.0
    %v1576 = vadd.f32 %v1572, 0.0
    %v1577 = vadd.f32 %v1573, 0.0
    %v1578 = vadd.f32 %v1574, 0.0
    %v1579 = vsub.f32 %v1547, %v1551
    %v1580 = vsub.f32 %v1548, %v1552
    %v1581 = vsub.f32 %v1549, %v1553
    %v1582 = vsub.f32 %v1550, %v1554
    %v1583 = vmul.f32 %v1579, 1.442695
    %v1584 = vpow.pop %v1583
    %v1585 = vmul.f32 %v1580, 1.442695
    %v1586 = vpow.pop %v1585
    %v1587 = vmul.f32 %v1581, 1.442695
    %v1588 = vpow.pop %v1587
    %v1589 = vmul.f32 %v1582, 1.442695
    %v1590 = vpow.pop %v1589
    %v1591 = vadd.f32 %v1567, %v1584
    %v1592 = vadd.f32 %v1568, %v1586
    %v1593 = vadd.f32 %v1569, %v1588
    %v1594 = vadd.f32 %v1570, %v1590
    %v1595 = vmul.f32 %v1584, %v1266
    %v1596 = vmul.f32 %v1586, %v1268
    %v1597 = vmul.f32 %v1588, %v1272
    %v1598 = vmul.f32 %v1590, %v1274
    %v1599 = vadd.f32 %v1575, %v1595
    %v1600 = vadd.f32 %v1576, %v1596
    %v1601 = vadd.f32 %v1577, %v1597
    %v1602 = vadd.f32 %v1578, %v1598
    %v1603 = vrcp.pop %v1591
    %v1604 = vrcp.pop %v1592
    %v1605 = vrcp.pop %v1593
    %v1606 = vrcp.pop %v1594
    %v1607 = vmul.f32 %v1599, %v1603
    %v1608 = vmul.f32 %v1600, %v1604
    %v1609 = vmul.f32 %v1601, %v1605
    %v1610 = vmul.f32 %v1602, %v1606
    %v1611 = vmul.f32 %v1607, %v873
    %v1612 = vmul.f32 %v1608, %v875
    %v1613 = vmul.f32 %v1609, %v877
    %v1614 = vmul.f32 %v1610, %v879
    %v1616 = vlaneseq
    %v1617 = vshrl.u32 %v1616, 7
    %v1618 = vsub.s32 0, %v1617
    %v1619 = vrot.slane %v356, %v1618
    %1621 = vmatprep.subr.mxu0 0.0
    %1622 = vmatpush1.msra.mxu0 %v338
    %1623 = vmatprep.subr.mxu0 0.0
    %1624 = vmatpush1.msra.mxu0 %v337
    %1625 = vmatprep.subr.mxu0 0.0
    %1626 = vmatpush1.msra.mxu0 %v336
    %1627 = vmatprep.subr.mxu0 0.0
    %1628 = vmatpush1.msra.mxu0 %v335
    %1629 = vmatprep.subr.mxu0 0.0
    %1630 = vmatpush1.msra.mxu0 %v334
    %1631 = vmatprep.subr.mxu0 0.0
    %1632 = vmatpush1.msra.mxu0 %v333
    %1633 = vmatprep.subr.mxu0 0.0
    %1634 = vmatpush1.msra.mxu0 %v332
    %1635 = vmatprep.subr.mxu0 0.0
    %1636 = vmatpush1.msra.mxu0 %v331
    %1637 = vmatprep.subr.mxu0 0.0
    %1638 = vmatpush1.msra.mxu0 %v330
    %1639 = vmatprep.subr.mxu0 0.0
    %1640 = vmatpush1.msra.mxu0 %v329
    %1641 = vmatprep.subr.mxu0 0.0
    %1642 = vmatpush1.msra.mxu0 %v328
    %1643 = vmatprep.subr.mxu0 0.0
    %1644 = vmatpush1.msra.mxu0 %v327
    %1645 = vmatprep.subr.mxu0 0.0
    %1646 = vmatpush1.msra.mxu0 %v326
    %1647 = vmatprep.subr.mxu0 0.0
    %1648 = vmatpush1.msra.mxu0 %v325
    %1649 = vmatprep.subr.mxu0 0.0
    %1650 = vmatpush1.msra.mxu0 %v324
    %1651 = vmatprep.subr.mxu0 0.0
    %1652 = vmatpush1.msra.mxu0 %v323
    %1653 = vmatprep.subr.mxu0 0.0
    %1654 = vmatpush2.msra.mxu0 %v354
    %1655 = vmatprep.subr.mxu0 0.0
    %1656 = vmatpush2.msra.mxu0 %v353
    %1657 = vmatprep.subr.mxu0 0.0
    %1658 = vmatpush2.msra.mxu0 %v352
    %1659 = vmatprep.subr.mxu0 0.0
    %1660 = vmatpush2.msra.mxu0 %v351
    %1661 = vmatprep.subr.mxu0 0.0
    %1662 = vmatpush2.msra.mxu0 %v350
    %1663 = vmatprep.subr.mxu0 0.0
    %1664 = vmatpush2.msra.mxu0 %v349
    %1665 = vmatprep.subr.mxu0 0.0
    %1666 = vmatpush2.msra.mxu0 %v348
    %1667 = vmatprep.subr.mxu0 0.0
    %1668 = vmatpush2.msra.mxu0 %v347
    %1669 = vmatprep.subr.mxu0 0.0
    %1670 = vmatpush2.msra.mxu0 %v346
    %1671 = vmatprep.subr.mxu0 0.0
    %1672 = vmatpush2.msra.mxu0 %v345
    %1673 = vmatprep.subr.mxu0 0.0
    %1674 = vmatpush2.msra.mxu0 %v344
    %1675 = vmatprep.subr.mxu0 0.0
    %1676 = vmatpush2.msra.mxu0 %v343
    %1677 = vmatprep.subr.mxu0 0.0
    %1678 = vmatpush2.msra.mxu0 %v342
    %1679 = vmatprep.subr.mxu0 0.0
    %1680 = vmatpush2.msra.mxu0 %v341
    %1681 = vmatprep.subr.mxu0 0.0
    %1682 = vmatpush2.msra.mxu0 %v340
    %1683 = vmatprep.subr.mxu0 0.0
    %1684 = vmatpush2.msra.mxu0 %v339
    %1685 = vmatprep.mubr.f32.mxu0 %v1612
    %1686 = vmatmul.mubr.f32.gmra.mxu0 %v1611
    %v1687 = vpop.f32.mrf.mxu0
    %v1688 = vadd.f32 %v1619, %v1687
    %v1689 = vpop.f32.mrf.mxu0
    %1690 = vmatprep.mubr.f32.mxu0 %v1614
    %1691 = vmatmul.mubr.f32.gmra.mxu0 %v1613
    %v1692 = vpop.f32.mrf.mxu0
    %v1693 = vadd.f32 %v1619, %v1692
    %v1694 = vpop.f32.mrf.mxu0
    %1695 = vdwg.mxu0
    %1696 = vst [vmem:[#allocation13] sm:$0xff] %v1688
    %1697 = vst [vmem:[#allocation13 + $0x8] sm:$0xff] %v1693
    %v1698 = vmul.f32 %v1112, %v677
    %v1699 = vmul.f32 %v1114, %v679
    %v1700 = vmul.f32 %v1118, %v683
    %v1701 = vmul.f32 %v1120, %v685
    %1702 = vmatprep.subr.mxu0 %v290
    %1703 = vmatpush1.msra.mxu0 %v289
    %1704 = vmatprep.subr.mxu0 %v288
    %1705 = vmatpush1.msra.mxu0 %v287
    %1706 = vmatprep.subr.mxu0 %v286
    %1707 = vmatpush1.msra.mxu0 %v285
    %1708 = vmatprep.subr.mxu0 %v284
    %1709 = vmatpush1.msra.mxu0 %v283
    %1710 = vmatprep.subr.mxu0 %v282
    %1711 = vmatpush1.msra.mxu0 %v281
    %1712 = vmatprep.subr.mxu0 %v280
    %1713 = vmatpush1.msra.mxu0 %v279
    %1714 = vmatprep.subr.mxu0 %v278
    %1715 = vmatpush1.msra.mxu0 %v277
    %1716 = vmatprep.subr.mxu0 %v276
    %1717 = vmatpush1.msra.mxu0 %v275
    %1718 = vmatprep.subr.mxu0 %v274
    %1719 = vmatpush1.msra.mxu0 %v273
    %1720 = vmatprep.subr.mxu0 %v272
    %1721 = vmatpush1.msra.mxu0 %v271
    %1722 = vmatprep.subr.mxu0 %v270
    %1723 = vmatpush1.msra.mxu0 %v269
    %1724 = vmatprep.subr.mxu0 %v268
    %1725 = vmatpush1.msra.mxu0 %v267
    %1726 = vmatprep.subr.mxu0 %v266
    %1727 = vmatpush1.msra.mxu0 %v265
    %1728 = vmatprep.subr.mxu0 %v264
    %1729 = vmatpush1.msra.mxu0 %v263
    %1730 = vmatprep.subr.mxu0 %v262
    %1731 = vmatpush1.msra.mxu0 %v261
    %1732 = vmatprep.subr.mxu0 %v260
    %1733 = vmatpush1.msra.mxu0 %v259
    %1734 = vmatprep.subr.mxu0 %v322
    %1735 = vmatpush2.msra.mxu0 %v321
    %1736 = vmatprep.subr.mxu0 %v320
    %1737 = vmatpush2.msra.mxu0 %v319
    %1738 = vmatprep.subr.mxu0 %v318
    %1739 = vmatpush2.msra.mxu0 %v317
    %1740 = vmatprep.subr.mxu0 %v316
    %1741 = vmatpush2.msra.mxu0 %v315
    %1742 = vmatprep.subr.mxu0 %v314
    %1743 = vmatpush2.msra.mxu0 %v313
    %1744 = vmatprep.subr.mxu0 %v312
    %1745 = vmatpush2.msra.mxu0 %v311
    %1746 = vmatprep.subr.mxu0 %v310
    %1747 = vmatpush2.msra.mxu0 %v309
    %1748 = vmatprep.subr.mxu0 %v308
    %1749 = vmatpush2.msra.mxu0 %v307
    %1750 = vmatprep.subr.mxu0 %v306
    %1751 = vmatpush2.msra.mxu0 %v305
    %1752 = vmatprep.subr.mxu0 %v304
    %1753 = vmatpush2.msra.mxu0 %v303
    %1754 = vmatprep.subr.mxu0 %v302
    %1755 = vmatpush2.msra.mxu0 %v301
    %1756 = vmatprep.subr.mxu0 %v300
    %1757 = vmatpush2.msra.mxu0 %v299
    %1758 = vmatprep.subr.mxu0 %v298
    %1759 = vmatpush2.msra.mxu0 %v297
    %1760 = vmatprep.subr.mxu0 %v296
    %1761 = vmatpush2.msra.mxu0 %v295
    %1762 = vmatprep.subr.mxu0 %v294
    %1763 = vmatpush2.msra.mxu0 %v293
    %1764 = vmatprep.subr.mxu0 %v292
    %1765 = vmatpush2.msra.mxu0 %v291
    %1766 = vmatprep.mubr.f32.mxu0 %v1699
    %1767 = vmatmul.mubr.f32.gmra.mxu0 %v1698
    %v1768 = vpop.f32.mrf.mxu0
    %v1769 = vadd.f32 0.0, %v1768
    %v1770 = vpop.f32.mrf.mxu0
    %v1771 = vadd.f32 0.0, %v1770
    %1772 = vmatprep.mubr.f32.mxu0 %v1701
    %1773 = vmatmul.mubr.f32.gmra.mxu0 %v1700
    %v1774 = vpop.f32.mrf.mxu0
    %v1775 = vadd.f32 0.0, %v1774
    %v1776 = vpop.f32.mrf.mxu0
    %v1777 = vadd.f32 0.0, %v1776
    %1778 = vdwg.mxu0
    %v1779 = vmul.f32 %v1769, 0.35355338
    %v1780 = vmul.f32 %v1771, 0.35355338
    %v1781 = vmul.f32 %v1775, 0.35355338
    %v1782 = vmul.f32 %v1777, 0.35355338
    %v1783 = vmul.f32 %v1112, %v1189
    %v1784 = vmul.f32 %v1114, %v1191
    %v1785 = vmul.f32 %v1118, %v1195
    %v1786 = vmul.f32 %v1120, %v1197
    %1787 = vmatprep.subr.mxu0 %v290
    %1788 = vmatpush1.msra.mxu0 %v289
    %1789 = vmatprep.subr.mxu0 %v288
    %1790 = vmatpush1.msra.mxu0 %v287
    %1791 = vmatprep.subr.mxu0 %v286
    %1792 = vmatpush1.msra.mxu0 %v285
    %1793 = vmatprep.subr.mxu0 %v284
    %1794 = vmatpush1.msra.mxu0 %v283
    %1795 = vmatprep.subr.mxu0 %v282
    %1796 = vmatpush1.msra.mxu0 %v281
    %1797 = vmatprep.subr.mxu0 %v280
    %1798 = vmatpush1.msra.mxu0 %v279
    %1799 = vmatprep.subr.mxu0 %v278
    %1800 = vmatpush1.msra.mxu0 %v277
    %1801 = vmatprep.subr.mxu0 %v276
    %1802 = vmatpush1.msra.mxu0 %v275
    %1803 = vmatprep.subr.mxu0 %v274
    %1804 = vmatpush1.msra.mxu0 %v273
    %1805 = vmatprep.subr.mxu0 %v272
    %1806 = vmatpush1.msra.mxu0 %v271
    %1807 = vmatprep.subr.mxu0 %v270
    %1808 = vmatpush1.msra.mxu0 %v269
    %1809 = vmatprep.subr.mxu0 %v268
    %1810 = vmatpush1.msra.mxu0 %v267
    %1811 = vmatprep.subr.mxu0 %v266
    %1812 = vmatpush1.msra.mxu0 %v265
    %1813 = vmatprep.subr.mxu0 %v264
    %1814 = vmatpush1.msra.mxu0 %v263
    %1815 = vmatprep.subr.mxu0 %v262
    %1816 = vmatpush1.msra.mxu0 %v261
    %1817 = vmatprep.subr.mxu0 %v260
    %1818 = vmatpush1.msra.mxu0 %v259
    %1819 = vmatprep.subr.mxu0 %v322
    %1820 = vmatpush2.msra.mxu0 %v321
    %1821 = vmatprep.subr.mxu0 %v320
    %1822 = vmatpush2.msra.mxu0 %v319
    %1823 = vmatprep.subr.mxu0 %v318
    %1824 = vmatpush2.msra.mxu0 %v317
    %1825 = vmatprep.subr.mxu0 %v316
    %1826 = vmatpush2.msra.mxu0 %v315
    %1827 = vmatprep.subr.mxu0 %v314
    %1828 = vmatpush2.msra.mxu0 %v313
    %1829 = vmatprep.subr.mxu0 %v312
    %1830 = vmatpush2.msra.mxu0 %v311
    %1831 = vmatprep.subr.mxu0 %v310
    %1832 = vmatpush2.msra.mxu0 %v309
    %1833 = vmatprep.subr.mxu0 %v308
    %1834 = vmatpush2.msra.mxu0 %v307
    %1835 = vmatprep.subr.mxu0 %v306
    %1836 = vmatpush2.msra.mxu0 %v305
    %1837 = vmatprep.subr.mxu0 %v304
    %1838 = vmatpush2.msra.mxu0 %v303
    %1839 = vmatprep.subr.mxu0 %v302
    %1840 = vmatpush2.msra.mxu0 %v301
    %1841 = vmatprep.subr.mxu0 %v300
    %1842 = vmatpush2.msra.mxu0 %v299
    %1843 = vmatprep.subr.mxu0 %v298
    %1844 = vmatpush2.msra.mxu0 %v297
    %1845 = vmatprep.subr.mxu0 %v296
    %1846 = vmatpush2.msra.mxu0 %v295
    %1847 = vmatprep.subr.mxu0 %v294
    %1848 = vmatpush2.msra.mxu0 %v293
    %1849 = vmatprep.subr.mxu0 %v292
    %1850 = vmatpush2.msra.mxu0 %v291
    %1851 = vmatprep.mubr.f32.mxu0 %v1784
    %1852 = vmatmul.mubr.f32.gmra.mxu0 %v1783
    %v1853 = vpop.f32.mrf.mxu0
    %v1854 = vadd.f32 0.0, %v1853
    %v1855 = vpop.f32.mrf.mxu0
    %v1856 = vadd.f32 0.0, %v1855
    %1857 = vmatprep.mubr.f32.mxu0 %v1786
    %1858 = vmatmul.mubr.f32.gmra.mxu0 %v1785
    %v1859 = vpop.f32.mrf.mxu0
    %v1860 = vadd.f32 0.0, %v1859
    %v1861 = vpop.f32.mrf.mxu0
    %v1862 = vadd.f32 0.0, %v1861
    %1863 = vdwg.mxu0
    %v1864 = vmul.f32 %v1854, 0.35355338
    %v1865 = vmul.f32 %v1856, 0.35355338
    %v1866 = vmul.f32 %v1860, 0.35355338
    %v1867 = vmul.f32 %v1862, 0.35355338
    %v1868 = vmax.f32 %v1779, %v1864
    %v1869 = vmax.f32 %v1780, %v1865
    %v1870 = vmax.f32 %v1781, %v1866
    %v1871 = vmax.f32 %v1782, %v1867
    %v1872 = vsub.f32 %v1779, %v1868
    %v1873 = vsub.f32 %v1780, %v1869
    %v1874 = vsub.f32 %v1781, %v1870
    %v1875 = vsub.f32 %v1782, %v1871
    %v1876 = vmul.f32 %v1872, 1.442695
    %v1877 = vpow.pop %v1876
    %v1878 = vmul.f32 %v1873, 1.442695
    %v1879 = vpow.pop %v1878
    %v1880 = vmul.f32 %v1874, 1.442695
    %v1881 = vpow.pop %v1880
    %v1882 = vmul.f32 %v1875, 1.442695
    %v1883 = vpow.pop %v1882
    %v1884 = vadd.f32 %v1877, 0.0
    %v1885 = vadd.f32 %v1879, 0.0
    %v1886 = vadd.f32 %v1881, 0.0
    %v1887 = vadd.f32 %v1883, 0.0
    %v1888 = vmul.f32 %v1877, %v754
    %v1889 = vmul.f32 %v1879, %v756
    %v1890 = vmul.f32 %v1881, %v760
    %v1891 = vmul.f32 %v1883, %v762
    %v1892 = vadd.f32 %v1888, 0.0
    %v1893 = vadd.f32 %v1889, 0.0
    %v1894 = vadd.f32 %v1890, 0.0
    %v1895 = vadd.f32 %v1891, 0.0
    %v1896 = vsub.f32 %v1864, %v1868
    %v1897 = vsub.f32 %v1865, %v1869
    %v1898 = vsub.f32 %v1866, %v1870
    %v1899 = vsub.f32 %v1867, %v1871
    %v1900 = vmul.f32 %v1896, 1.442695
    %v1901 = vpow.pop %v1900
    %v1902 = vmul.f32 %v1897, 1.442695
    %v1903 = vpow.pop %v1902
    %v1904 = vmul.f32 %v1898, 1.442695
    %v1905 = vpow.pop %v1904
    %v1906 = vmul.f32 %v1899, 1.442695
    %v1907 = vpow.pop %v1906
    %v1908 = vadd.f32 %v1884, %v1901
    %v1909 = vadd.f32 %v1885, %v1903
    %v1910 = vadd.f32 %v1886, %v1905
    %v1911 = vadd.f32 %v1887, %v1907
    %v1912 = vmul.f32 %v1901, %v1266
    %v1913 = vmul.f32 %v1903, %v1268
    %v1914 = vmul.f32 %v1905, %v1272
    %v1915 = vmul.f32 %v1907, %v1274
    %v1916 = vadd.f32 %v1892, %v1912
    %v1917 = vadd.f32 %v1893, %v1913
    %v1918 = vadd.f32 %v1894, %v1914
    %v1919 = vadd.f32 %v1895, %v1915
    %v1920 = vrcp.pop %v1908
    %v1921 = vrcp.pop %v1909
    %v1922 = vrcp.pop %v1910
    %v1923 = vrcp.pop %v1911
    %v1924 = vmul.f32 %v1916, %v1920
    %v1925 = vmul.f32 %v1917, %v1921
    %v1926 = vmul.f32 %v1918, %v1922
    %v1927 = vmul.f32 %v1919, %v1923
    %v1928 = vmul.f32 %v1924, %v1374
    %v1929 = vmul.f32 %v1925, %v1376
    %v1930 = vmul.f32 %v1926, %v1378
    %v1931 = vmul.f32 %v1927, %v1380
    %1932 = vmatprep.subr.mxu0 0.0
    %1933 = vmatpush1.msra.mxu0 %v338
    %1934 = vmatprep.subr.mxu0 0.0
    %1935 = vmatpush1.msra.mxu0 %v337
    %1936 = vmatprep.subr.mxu0 0.0
    %1937 = vmatpush1.msra.mxu0 %v336
    %1938 = vmatprep.subr.mxu0 0.0
    %1939 = vmatpush1.msra.mxu0 %v335
    %1940 = vmatprep.subr.mxu0 0.0
    %1941 = vmatpush1.msra.mxu0 %v334
    %1942 = vmatprep.subr.mxu0 0.0
    %1943 = vmatpush1.msra.mxu0 %v333
    %1944 = vmatprep.subr.mxu0 0.0
    %1945 = vmatpush1.msra.mxu0 %v332
    %1946 = vmatprep.subr.mxu0 0.0
    %1947 = vmatpush1.msra.mxu0 %v331
    %1948 = vmatprep.subr.mxu0 0.0
    %1949 = vmatpush1.msra.mxu0 %v330
    %1950 = vmatprep.subr.mxu0 0.0
    %1951 = vmatpush1.msra.mxu0 %v329
    %1952 = vmatprep.subr.mxu0 0.0
    %1953 = vmatpush1.msra.mxu0 %v328
    %1954 = vmatprep.subr.mxu0 0.0
    %1955 = vmatpush1.msra.mxu0 %v327
    %1956 = vmatprep.subr.mxu0 0.0
    %1957 = vmatpush1.msra.mxu0 %v326
    %1958 = vmatprep.subr.mxu0 0.0
    %1959 = vmatpush1.msra.mxu0 %v325
    %1960 = vmatprep.subr.mxu0 0.0
    %1961 = vmatpush1.msra.mxu0 %v324
    %1962 = vmatprep.subr.mxu0 0.0
    %1963 = vmatpush1.msra.mxu0 %v323
    %1964 = vmatprep.subr.mxu0 0.0
    %1965 = vmatpush2.msra.mxu0 %v354
    %1966 = vmatprep.subr.mxu0 0.0
    %1967 = vmatpush2.msra.mxu0 %v353
    %1968 = vmatprep.subr.mxu0 0.0
    %1969 = vmatpush2.msra.mxu0 %v352
    %1970 = vmatprep.subr.mxu0 0.0
    %1971 = vmatpush2.msra.mxu0 %v351
    %1972 = vmatprep.subr.mxu0 0.0
    %1973 = vmatpush2.msra.mxu0 %v350
    %1974 = vmatprep.subr.mxu0 0.0
    %1975 = vmatpush2.msra.mxu0 %v349
    %1976 = vmatprep.subr.mxu0 0.0
    %1977 = vmatpush2.msra.mxu0 %v348
    %1978 = vmatprep.subr.mxu0 0.0
    %1979 = vmatpush2.msra.mxu0 %v347
    %1980 = vmatprep.subr.mxu0 0.0
    %1981 = vmatpush2.msra.mxu0 %v346
    %1982 = vmatprep.subr.mxu0 0.0
    %1983 = vmatpush2.msra.mxu0 %v345
    %1984 = vmatprep.subr.mxu0 0.0
    %1985 = vmatpush2.msra.mxu0 %v344
    %1986 = vmatprep.subr.mxu0 0.0
    %1987 = vmatpush2.msra.mxu0 %v343
    %1988 = vmatprep.subr.mxu0 0.0
    %1989 = vmatpush2.msra.mxu0 %v342
    %1990 = vmatprep.subr.mxu0 0.0
    %1991 = vmatpush2.msra.mxu0 %v341
    %1992 = vmatprep.subr.mxu0 0.0
    %1993 = vmatpush2.msra.mxu0 %v340
    %1994 = vmatprep.subr.mxu0 0.0
    %1995 = vmatpush2.msra.mxu0 %v339
    %1996 = vmatprep.mubr.f32.mxu0 %v1929
    %1997 = vmatmul.mubr.f32.gmra.mxu0 %v1928
    %v1998 = vpop.f32.mrf.mxu0
    %v1999 = vadd.f32 %v1619, %v1998
    %v2000 = vpop.f32.mrf.mxu0
    %2001 = vmatprep.mubr.f32.mxu0 %v1931
    %2002 = vmatmul.mubr.f32.gmra.mxu0 %v1930
    %v2003 = vpop.f32.mrf.mxu0
    %v2004 = vadd.f32 %v1619, %v2003
    %v2005 = vpop.f32.mrf.mxu0
    %2006 = vdwg.mxu0
    %s2007 = scalar_lea.vmem [#allocation13], 16
    %2008 = vst [vmem:[%s2007] sm:$0xff] %v1999
    %2009 = vst [vmem:[%s2007 + $0x8] sm:$0xff] %v2004
    // Predicated region
    $region62: #{tpu_custom_call.1} parent=1 // pred_check
      _
    $region63: #{tpu_custom_call.1} parent=1 // pred_check_branch
      %2011 = sbr.rel (0) target = $region65
    $region64: #{tpu_custom_call.1} parent=1 // pred_region
      %s2013 = ssub.s32 512, 512
      %2014 = vsyncadd [#allocation4], %s2013
      %s2015 = sshll.u32 [#allocation13], 4
      %s2016 = int_to_ptr.vmem [resolvable:$true] %s2015
      %2021 = dma.vmem_to_hbm [thread:$0]  %s2016, 512, %s9, [#allocation4], 128, 128, 8
    $region65: #{tpu_custom_call.1} parent=1 // pred_fallthru
      _
    // Predicated region
    $region66: #{tpu_custom_call.1} parent=1 // pred_check
      _
    $region67: #{tpu_custom_call.1} parent=1 // pred_check_branch
      %2023 = sbr.rel (0) target = $region69
    $region68: #{tpu_custom_call.1} parent=1 // pred_region
      %2024 = dma.done [#allocation4], 512
    $region69: #{tpu_custom_call.1} parent=1 // pred_fallthru
      _
    %2025 = vsyncpa [#allocation3], 1
    %2026 = vsyncpa [#allocation6], 1
    %2027 = vsyncpa [#allocation9], 1
    %2028 = vsyncpa [#allocation12], 1
    %2029 = vsyncpa [#allocation4], 1

</llo_original>
